<compile_context>
chip_gen: v6e
topology: v6e:2x2x1
jax: 0.10.0
libtpu: 0.0.40
codegen_flags: <defaults>
</compile_context>

<pallas_src>
import jax
import jax.numpy as jnp
from jax.experimental import pallas as pl
from jax.experimental.pallas import tpu as pltpu


# ----------------------------------------------------------------------------
# Fused Pallas kernel: stacked GRU layers + final Linear
# ----------------------------------------------------------------------------
def _make_fused_rnn_kernel(T, B, H, num_layers):
    """Returns a kernel computing the full forward pass in one invocation.

    Kernel ref order (inputs, then output):
      x_flat (T*B, F),
      per layer l: w_ih_l (F_l, 3H), w_hh_l (H, 3H), b_ih_l (1, 3H), b_hh_l (1, 3H),
      w_cls (H, C), b_cls (1, C),
      out (B, C)
    All weights packed along the gate axis in torch order [r | z | n].
    """

    def kernel(x_ref, *refs):
        layer_refs = refs[: 4 * num_layers]
        w_cls_ref = refs[4 * num_layers]
        b_cls_ref = refs[4 * num_layers + 1]
        out_ref = refs[4 * num_layers + 2]

        xin = x_ref[...]                         # (T*B, F): current layer's input sequence
        h = None
        for l in range(num_layers):
            w_ih = layer_refs[4 * l][...]        # (F_l, 3H)
            w_hh = layer_refs[4 * l + 1][...]    # (H, 3H)
            b_ih = layer_refs[4 * l + 2][...]    # (1, 3H)
            b_hh = layer_refs[4 * l + 3][...]    # (1, 3H)

            # Hoisted input projection: one big MXU matmul for the whole sequence
            # instead of 3 tiny matmuls per timestep on the serial critical path.
            gx_all = (
                jnp.dot(xin, w_ih, preferred_element_type=jnp.float32) + b_ih
            )                                    # (T*B, 3H)

            h = jnp.zeros((B, H), jnp.float32)
            hs = []
            # Static, fully-unrolled recurrence (T is small); ONE packed matmul/step.
            for t in range(T):
                gx_t = gx_all[t * B:(t + 1) * B, :]        # (B, 3H), sublane-aligned
                gh = jnp.dot(h, w_hh, preferred_element_type=jnp.float32) + b_hh
                r = jax.nn.sigmoid(gx_t[:, :H] + gh[:, :H])
                z = jax.nn.sigmoid(gx_t[:, H:2 * H] + gh[:, H:2 * H])
                n = jnp.tanh(gx_t[:, 2 * H:] + r * gh[:, 2 * H:])
                h = (1.0 - z) * n + z * h
                if l < num_layers - 1:
                    hs.append(h)                  # lower layers feed the next layer
            if l < num_layers - 1:
                xin = jnp.concatenate(hs, axis=0)  # (T*B, H), stays on-chip

        # Final classifier on the top layer's last hidden state only (== out[-1]).
        out_ref[...] = (
            jnp.dot(h, w_cls_ref[...], preferred_element_type=jnp.float32)
            + b_cls_ref[...]
        )

    return kernel


# ----------------------------------------------------------------------------
# Wrapper (= torch RNN.forward)
# ----------------------------------------------------------------------------
@jax.jit
def rnn_forward(x_nchw, params):
    # torch: x.permute(0,2,3,1).reshape(N,H,-1).permute(1,0,2)
    N, C, Hs, W = x_nchw.shape
    x = jnp.transpose(x_nchw, (0, 2, 3, 1)).reshape(N, Hs, W * C)
    x = jnp.transpose(x, (1, 0, 2))              # (T=H, B=N, F=W*C)
    T, B, F = x.shape

    H = params["gru"][0][1].shape[0]
    num_layers = len(params["gru"])
    num_class = params["w_cls"].shape[1]

    # Pad batch to a multiple of 8 (sublane alignment / full vreg sublane use).
    # GRU rows are independent, so padded rows never affect real ones.
    B_pad = max(8, ((B + 7) // 8) * 8)
    if B_pad != B:
        x = jnp.pad(x, ((0, 0), (0, B_pad - B), (0, 0)))
    x_flat = x.reshape(T * B_pad, F)

    weight_args = []
    for (w_ih, w_hh, b_ih, b_hh) in params["gru"]:
        weight_args += [w_ih, w_hh, b_ih, b_hh]
    weight_args += [params["w_cls"], params["b_cls"]]

    kernel = _make_fused_rnn_kernel(T, B_pad, H, num_layers)
    vmem = pltpu.MemorySpace.VMEM
    out = pl.pallas_call(
        kernel,
        out_shape=jax.ShapeDtypeStruct((B_pad, num_class), jnp.float32),
        in_specs=[pl.BlockSpec(memory_space=vmem)] * (1 + len(weight_args)),
        out_specs=pl.BlockSpec(memory_space=vmem),
    )(x_flat, *weight_args)
    return out[:B]


# ----------------------------------------------------------------------------
# Parameter init (packed gate layout [r | z | n], like torch.nn.GRU)
# ----------------------------------------------------------------------------
def init_params(key, in_feature, hidden_feature, num_class, num_layers):
    params = {"gru": []}
    k_gru = 1.0 / jnp.sqrt(hidden_feature)
    feat = in_feature
    for _ in range(num_layers):
        key, k1, k2, k3, k4 = jax.random.split(key, 5)
        w_ih = jax.random.uniform(k1, (feat, 3 * hidden_feature), jnp.float32, -k_gru, k_gru)
        w_hh = jax.random.uniform(k2, (hidden_feature, 3 * hidden_feature), jnp.float32, -k_gru, k_gru)
        b_ih = jax.random.uniform(k3, (1, 3 * hidden_feature), jnp.float32, -k_gru, k_gru)
        b_hh = jax.random.uniform(k4, (1, 3 * hidden_feature), jnp.float32, -k_gru, k_gru)
        params["gru"].append((w_ih, w_hh, b_ih, b_hh))
        feat = hidden_feature
    key, k5, k6 = jax.random.split(key, 3)
    params["w_cls"] = jax.random.uniform(k5, (hidden_feature, num_class), jnp.float32, -k_gru, k_gru)
    params["b_cls"] = jax.random.uniform(k6, (1, num_class), jnp.float32, -k_gru, k_gru)
    return params


# ----------------------------------------------------------------------------
# Pure-JAX reference (for correctness check)
# ----------------------------------------------------------------------------
def gru_layer_ref(x_seq, w_ih, w_hh, b_ih, b_hh):
    B = x_seq.shape[1]
    H = w_hh.shape[0]

    def step(h, x_t):
        gx = x_t @ w_ih + b_ih
        gh = h @ w_hh + b_hh
        r = jax.nn.sigmoid(gx[:, :H] + gh[:, :H])
        z = jax.nn.sigmoid(gx[:, H:2 * H] + gh[:, H:2 * H])
        n = jnp.tanh(gx[:, 2 * H:] + r * gh[:, 2 * H:])
        h_new = (1.0 - z) * n + z * h
        return h_new, h_new

    h0 = jnp.zeros((B, H), jnp.float32)
    _, out = jax.lax.scan(step, h0, x_seq)
    return out


def rnn_forward_ref(x_nchw, params):
    N, C, Hs, W = x_nchw.shape
    x = jnp.transpose(x_nchw, (0, 2, 3, 1)).reshape(N, Hs, W * C)
    x = jnp.transpose(x, (1, 0, 2))
    h = x
    for (w_ih, w_hh, b_ih, b_hh) in params["gru"]:
        h = gru_layer_ref(h, w_ih, w_hh, b_ih, b_hh)
    return h[-1] @ params["w_cls"] + params["b_cls"]


# ----------------------------------------------------------------------------
if __name__ == "__main__":
    # Small shapes consistent with the module:
    #   in_feature = C*W, seq_len = H, 2 classes, 2 GRU layers
    batch, C, Hs, W = 2, 3, 8, 16          # in_feature = 3*16 = 48, seq_len = 8
    hidden_feature, num_class, num_layers = 32, 2, 2

    key = jax.random.PRNGKey(0)
    key, kx = jax.random.split(key)
    x = jax.random.normal(kx, (batch, C, Hs, W), jnp.float32)

    params = init_params(key, in_feature=C * W, hidden_feature=hidden_feature,
                         num_class=num_class, num_layers=num_layers)

    out = jax.block_until_ready(rnn_forward(x, params))
    assert out.shape == (batch, num_class), out.shape

    ref = jax.block_until_ready(rnn_forward_ref(x, params))
    assert jnp.allclose(out, ref, atol=2e-2, rtol=2e-2), (out, ref)

    print("KERNEL_OK")
</pallas_src>

<mosaic_0001>
module attributes {stable_mosaic.version = 11 : i64} {
  func.func @kernel(%arg0: memref<64x48xf32, #tpu.memory_space<vmem>>, %arg1: memref<48x96xf32, #tpu.memory_space<vmem>>, %arg2: memref<32x96xf32, #tpu.memory_space<vmem>>, %arg3: memref<1x96xf32, #tpu.memory_space<vmem>>, %arg4: memref<1x96xf32, #tpu.memory_space<vmem>>, %arg5: memref<32x96xf32, #tpu.memory_space<vmem>>, %arg6: memref<32x96xf32, #tpu.memory_space<vmem>>, %arg7: memref<1x96xf32, #tpu.memory_space<vmem>>, %arg8: memref<1x96xf32, #tpu.memory_space<vmem>>, %arg9: memref<32x2xf32, #tpu.memory_space<vmem>>, %arg10: memref<1x2xf32, #tpu.memory_space<vmem>>, %arg11: memref<8x2xf32, #tpu.memory_space<vmem>>) attributes {dimension_semantics = [], scalar_prefetch = 0 : i64, scratch_operands = 0 : i64, tpu.core_type = #tpu.core_type<tc>} {
    %c0 = arith.constant 0 : index
    %c0_0 = arith.constant 0 : index
    %0 = vector.load %arg0[%c0, %c0_0] : memref<64x48xf32, #tpu.memory_space<vmem>>, vector<64x48xf32>
    %c0_1 = arith.constant 0 : index
    %c0_2 = arith.constant 0 : index
    %1 = vector.load %arg1[%c0_1, %c0_2] : memref<48x96xf32, #tpu.memory_space<vmem>>, vector<48x96xf32>
    %c0_3 = arith.constant 0 : index
    %c0_4 = arith.constant 0 : index
    %2 = vector.load %arg2[%c0_3, %c0_4] : memref<32x96xf32, #tpu.memory_space<vmem>>, vector<32x96xf32>
    %c0_5 = arith.constant 0 : index
    %c0_6 = arith.constant 0 : index
    %3 = vector.load %arg3[%c0_5, %c0_6] : memref<1x96xf32, #tpu.memory_space<vmem>>, vector<1x96xf32>
    %c0_7 = arith.constant 0 : index
    %c0_8 = arith.constant 0 : index
    %4 = vector.load %arg4[%c0_7, %c0_8] : memref<1x96xf32, #tpu.memory_space<vmem>>, vector<1x96xf32>
    %cst = arith.constant dense<0.000000e+00> : vector<64x96xf32>
    %5 = tpu.matmul %0, %1, %cst {dimension_numbers = #tpu.dot_dimension_numbers<[1], [0], [0], [1], [0, 0, 1, 1], [], []>} : vector<64x48xf32>, vector<48x96xf32>, vector<64x96xf32> -> vector<64x96xf32>
    %6 = vector.broadcast %3 : vector<1x96xf32> to vector<64x96xf32>
    %7 = arith.addf %5, %6 : vector<64x96xf32>
    %cst_9 = arith.constant 0.000000e+00 : f32
    %8 = vector.broadcast %cst_9 : f32 to vector<8x32xf32>
    %9 = vector.extract_strided_slice %7 {offsets = [0, 0], sizes = [8, 96], strides = [1, 1]} : vector<64x96xf32> to vector<8x96xf32>
    %cst_10 = arith.constant dense<0.000000e+00> : vector<8x96xf32>
    %10 = tpu.matmul %8, %2, %cst_10 {dimension_numbers = #tpu.dot_dimension_numbers<[1], [0], [0], [1], [0, 0, 1, 1], [], []>} : vector<8x32xf32>, vector<32x96xf32>, vector<8x96xf32> -> vector<8x96xf32>
    %11 = vector.broadcast %4 : vector<1x96xf32> to vector<8x96xf32>
    %12 = arith.addf %10, %11 : vector<8x96xf32>
    %13 = vector.extract_strided_slice %9 {offsets = [0, 0], sizes = [8, 32], strides = [1, 1]} : vector<8x96xf32> to vector<8x32xf32>
    %14 = vector.extract_strided_slice %12 {offsets = [0, 0], sizes = [8, 32], strides = [1, 1]} : vector<8x96xf32> to vector<8x32xf32>
    %15 = arith.addf %13, %14 : vector<8x32xf32>
    %16 = arith.negf %15 : vector<8x32xf32>
    %17 = math.exp %16 : vector<8x32xf32>
    %cst_11 = arith.constant 1.000000e+00 : f32
    %18 = vector.broadcast %cst_11 : f32 to vector<8x32xf32>
    %19 = arith.addf %18, %17 : vector<8x32xf32>
    %20 = arith.divf %18, %19 : vector<8x32xf32>
    %21 = vector.extract_strided_slice %9 {offsets = [0, 32], sizes = [8, 32], strides = [1, 1]} : vector<8x96xf32> to vector<8x32xf32>
    %22 = vector.extract_strided_slice %12 {offsets = [0, 32], sizes = [8, 32], strides = [1, 1]} : vector<8x96xf32> to vector<8x32xf32>
    %23 = arith.addf %21, %22 : vector<8x32xf32>
    %24 = arith.negf %23 : vector<8x32xf32>
    %25 = math.exp %24 : vector<8x32xf32>
    %cst_12 = arith.constant 1.000000e+00 : f32
    %26 = vector.broadcast %cst_12 : f32 to vector<8x32xf32>
    %27 = arith.addf %26, %25 : vector<8x32xf32>
    %28 = arith.divf %26, %27 : vector<8x32xf32>
    %29 = vector.extract_strided_slice %9 {offsets = [0, 64], sizes = [8, 32], strides = [1, 1]} : vector<8x96xf32> to vector<8x32xf32>
    %30 = vector.extract_strided_slice %12 {offsets = [0, 64], sizes = [8, 32], strides = [1, 1]} : vector<8x96xf32> to vector<8x32xf32>
    %31 = arith.mulf %20, %30 : vector<8x32xf32>
    %32 = arith.addf %29, %31 : vector<8x32xf32>
    %33 = math.tanh %32 : vector<8x32xf32>
    %cst_13 = arith.constant 1.000000e+00 : f32
    %34 = vector.broadcast %cst_13 : f32 to vector<8x32xf32>
    %35 = arith.subf %34, %28 : vector<8x32xf32>
    %36 = arith.mulf %35, %33 : vector<8x32xf32>
    %37 = arith.mulf %28, %8 : vector<8x32xf32>
    %38 = arith.addf %36, %37 : vector<8x32xf32>
    %39 = vector.extract_strided_slice %7 {offsets = [8, 0], sizes = [8, 96], strides = [1, 1]} : vector<64x96xf32> to vector<8x96xf32>
    %cst_14 = arith.constant dense<0.000000e+00> : vector<8x96xf32>
    %40 = tpu.matmul %38, %2, %cst_14 {dimension_numbers = #tpu.dot_dimension_numbers<[1], [0], [0], [1], [0, 0, 1, 1], [], []>} : vector<8x32xf32>, vector<32x96xf32>, vector<8x96xf32> -> vector<8x96xf32>
    %41 = vector.broadcast %4 : vector<1x96xf32> to vector<8x96xf32>
    %42 = arith.addf %40, %41 : vector<8x96xf32>
    %43 = vector.extract_strided_slice %39 {offsets = [0, 0], sizes = [8, 32], strides = [1, 1]} : vector<8x96xf32> to vector<8x32xf32>
    %44 = vector.extract_strided_slice %42 {offsets = [0, 0], sizes = [8, 32], strides = [1, 1]} : vector<8x96xf32> to vector<8x32xf32>
    %45 = arith.addf %43, %44 : vector<8x32xf32>
    %46 = arith.negf %45 : vector<8x32xf32>
    %47 = math.exp %46 : vector<8x32xf32>
    %cst_15 = arith.constant 1.000000e+00 : f32
    %48 = vector.broadcast %cst_15 : f32 to vector<8x32xf32>
    %49 = arith.addf %48, %47 : vector<8x32xf32>
    %50 = arith.divf %48, %49 : vector<8x32xf32>
    %51 = vector.extract_strided_slice %39 {offsets = [0, 32], sizes = [8, 32], strides = [1, 1]} : vector<8x96xf32> to vector<8x32xf32>
    %52 = vector.extract_strided_slice %42 {offsets = [0, 32], sizes = [8, 32], strides = [1, 1]} : vector<8x96xf32> to vector<8x32xf32>
    %53 = arith.addf %51, %52 : vector<8x32xf32>
    %54 = arith.negf %53 : vector<8x32xf32>
    %55 = math.exp %54 : vector<8x32xf32>
    %cst_16 = arith.constant 1.000000e+00 : f32
    %56 = vector.broadcast %cst_16 : f32 to vector<8x32xf32>
    %57 = arith.addf %56, %55 : vector<8x32xf32>
    %58 = arith.divf %56, %57 : vector<8x32xf32>
    %59 = vector.extract_strided_slice %39 {offsets = [0, 64], sizes = [8, 32], strides = [1, 1]} : vector<8x96xf32> to vector<8x32xf32>
    %60 = vector.extract_strided_slice %42 {offsets = [0, 64], sizes = [8, 32], strides = [1, 1]} : vector<8x96xf32> to vector<8x32xf32>
    %61 = arith.mulf %50, %60 : vector<8x32xf32>
    %62 = arith.addf %59, %61 : vector<8x32xf32>
    %63 = math.tanh %62 : vector<8x32xf32>
    %cst_17 = arith.constant 1.000000e+00 : f32
    %64 = vector.broadcast %cst_17 : f32 to vector<8x32xf32>
    %65 = arith.subf %64, %58 : vector<8x32xf32>
    %66 = arith.mulf %65, %63 : vector<8x32xf32>
    %67 = arith.mulf %58, %38 : vector<8x32xf32>
    %68 = arith.addf %66, %67 : vector<8x32xf32>
    %69 = vector.extract_strided_slice %7 {offsets = [16, 0], sizes = [8, 96], strides = [1, 1]} : vector<64x96xf32> to vector<8x96xf32>
    %cst_18 = arith.constant dense<0.000000e+00> : vector<8x96xf32>
    %70 = tpu.matmul %68, %2, %cst_18 {dimension_numbers = #tpu.dot_dimension_numbers<[1], [0], [0], [1], [0, 0, 1, 1], [], []>} : vector<8x32xf32>, vector<32x96xf32>, vector<8x96xf32> -> vector<8x96xf32>
    %71 = vector.broadcast %4 : vector<1x96xf32> to vector<8x96xf32>
    %72 = arith.addf %70, %71 : vector<8x96xf32>
    %73 = vector.extract_strided_slice %69 {offsets = [0, 0], sizes = [8, 32], strides = [1, 1]} : vector<8x96xf32> to vector<8x32xf32>
    %74 = vector.extract_strided_slice %72 {offsets = [0, 0], sizes = [8, 32], strides = [1, 1]} : vector<8x96xf32> to vector<8x32xf32>
    %75 = arith.addf %73, %74 : vector<8x32xf32>
    %76 = arith.negf %75 : vector<8x32xf32>
    %77 = math.exp %76 : vector<8x32xf32>
    %cst_19 = arith.constant 1.000000e+00 : f32
    %78 = vector.broadcast %cst_19 : f32 to vector<8x32xf32>
    %79 = arith.addf %78, %77 : vector<8x32xf32>
    %80 = arith.divf %78, %79 : vector<8x32xf32>
    %81 = vector.extract_strided_slice %69 {offsets = [0, 32], sizes = [8, 32], strides = [1, 1]} : vector<8x96xf32> to vector<8x32xf32>
    %82 = vector.extract_strided_slice %72 {offsets = [0, 32], sizes = [8, 32], strides = [1, 1]} : vector<8x96xf32> to vector<8x32xf32>
    %83 = arith.addf %81, %82 : vector<8x32xf32>
    %84 = arith.negf %83 : vector<8x32xf32>
    %85 = math.exp %84 : vector<8x32xf32>
    %cst_20 = arith.constant 1.000000e+00 : f32
    %86 = vector.broadcast %cst_20 : f32 to vector<8x32xf32>
    %87 = arith.addf %86, %85 : vector<8x32xf32>
    %88 = arith.divf %86, %87 : vector<8x32xf32>
    %89 = vector.extract_strided_slice %69 {offsets = [0, 64], sizes = [8, 32], strides = [1, 1]} : vector<8x96xf32> to vector<8x32xf32>
    %90 = vector.extract_strided_slice %72 {offsets = [0, 64], sizes = [8, 32], strides = [1, 1]} : vector<8x96xf32> to vector<8x32xf32>
    %91 = arith.mulf %80, %90 : vector<8x32xf32>
    %92 = arith.addf %89, %91 : vector<8x32xf32>
    %93 = math.tanh %92 : vector<8x32xf32>
    %cst_21 = arith.constant 1.000000e+00 : f32
    %94 = vector.broadcast %cst_21 : f32 to vector<8x32xf32>
    %95 = arith.subf %94, %88 : vector<8x32xf32>
    %96 = arith.mulf %95, %93 : vector<8x32xf32>
    %97 = arith.mulf %88, %68 : vector<8x32xf32>
    %98 = arith.addf %96, %97 : vector<8x32xf32>
    %99 = vector.extract_strided_slice %7 {offsets = [24, 0], sizes = [8, 96], strides = [1, 1]} : vector<64x96xf32> to vector<8x96xf32>
    %cst_22 = arith.constant dense<0.000000e+00> : vector<8x96xf32>
    %100 = tpu.matmul %98, %2, %cst_22 {dimension_numbers = #tpu.dot_dimension_numbers<[1], [0], [0], [1], [0, 0, 1, 1], [], []>} : vector<8x32xf32>, vector<32x96xf32>, vector<8x96xf32> -> vector<8x96xf32>
    %101 = vector.broadcast %4 : vector<1x96xf32> to vector<8x96xf32>
    %102 = arith.addf %100, %101 : vector<8x96xf32>
    %103 = vector.extract_strided_slice %99 {offsets = [0, 0], sizes = [8, 32], strides = [1, 1]} : vector<8x96xf32> to vector<8x32xf32>
    %104 = vector.extract_strided_slice %102 {offsets = [0, 0], sizes = [8, 32], strides = [1, 1]} : vector<8x96xf32> to vector<8x32xf32>
    %105 = arith.addf %103, %104 : vector<8x32xf32>
    %106 = arith.negf %105 : vector<8x32xf32>
    %107 = math.exp %106 : vector<8x32xf32>
    %cst_23 = arith.constant 1.000000e+00 : f32
    %108 = vector.broadcast %cst_23 : f32 to vector<8x32xf32>
    %109 = arith.addf %108, %107 : vector<8x32xf32>
    %110 = arith.divf %108, %109 : vector<8x32xf32>
    %111 = vector.extract_strided_slice %99 {offsets = [0, 32], sizes = [8, 32], strides = [1, 1]} : vector<8x96xf32> to vector<8x32xf32>
    %112 = vector.extract_strided_slice %102 {offsets = [0, 32], sizes = [8, 32], strides = [1, 1]} : vector<8x96xf32> to vector<8x32xf32>
    %113 = arith.addf %111, %112 : vector<8x32xf32>
    %114 = arith.negf %113 : vector<8x32xf32>
    %115 = math.exp %114 : vector<8x32xf32>
    %cst_24 = arith.constant 1.000000e+00 : f32
    %116 = vector.broadcast %cst_24 : f32 to vector<8x32xf32>
    %117 = arith.addf %116, %115 : vector<8x32xf32>
    %118 = arith.divf %116, %117 : vector<8x32xf32>
    %119 = vector.extract_strided_slice %99 {offsets = [0, 64], sizes = [8, 32], strides = [1, 1]} : vector<8x96xf32> to vector<8x32xf32>
    %120 = vector.extract_strided_slice %102 {offsets = [0, 64], sizes = [8, 32], strides = [1, 1]} : vector<8x96xf32> to vector<8x32xf32>
    %121 = arith.mulf %110, %120 : vector<8x32xf32>
    %122 = arith.addf %119, %121 : vector<8x32xf32>
    %123 = math.tanh %122 : vector<8x32xf32>
    %cst_25 = arith.constant 1.000000e+00 : f32
    %124 = vector.broadcast %cst_25 : f32 to vector<8x32xf32>
    %125 = arith.subf %124, %118 : vector<8x32xf32>
    %126 = arith.mulf %125, %123 : vector<8x32xf32>
    %127 = arith.mulf %118, %98 : vector<8x32xf32>
    %128 = arith.addf %126, %127 : vector<8x32xf32>
    %129 = vector.extract_strided_slice %7 {offsets = [32, 0], sizes = [8, 96], strides = [1, 1]} : vector<64x96xf32> to vector<8x96xf32>
    %cst_26 = arith.constant dense<0.000000e+00> : vector<8x96xf32>
    %130 = tpu.matmul %128, %2, %cst_26 {dimension_numbers = #tpu.dot_dimension_numbers<[1], [0], [0], [1], [0, 0, 1, 1], [], []>} : vector<8x32xf32>, vector<32x96xf32>, vector<8x96xf32> -> vector<8x96xf32>
    %131 = vector.broadcast %4 : vector<1x96xf32> to vector<8x96xf32>
    %132 = arith.addf %130, %131 : vector<8x96xf32>
    %133 = vector.extract_strided_slice %129 {offsets = [0, 0], sizes = [8, 32], strides = [1, 1]} : vector<8x96xf32> to vector<8x32xf32>
    %134 = vector.extract_strided_slice %132 {offsets = [0, 0], sizes = [8, 32], strides = [1, 1]} : vector<8x96xf32> to vector<8x32xf32>
    %135 = arith.addf %133, %134 : vector<8x32xf32>
    %136 = arith.negf %135 : vector<8x32xf32>
    %137 = math.exp %136 : vector<8x32xf32>
    %cst_27 = arith.constant 1.000000e+00 : f32
    %138 = vector.broadcast %cst_27 : f32 to vector<8x32xf32>
    %139 = arith.addf %138, %137 : vector<8x32xf32>
    %140 = arith.divf %138, %139 : vector<8x32xf32>
    %141 = vector.extract_strided_slice %129 {offsets = [0, 32], sizes = [8, 32], strides = [1, 1]} : vector<8x96xf32> to vector<8x32xf32>
    %142 = vector.extract_strided_slice %132 {offsets = [0, 32], sizes = [8, 32], strides = [1, 1]} : vector<8x96xf32> to vector<8x32xf32>
    %143 = arith.addf %141, %142 : vector<8x32xf32>
    %144 = arith.negf %143 : vector<8x32xf32>
    %145 = math.exp %144 : vector<8x32xf32>
    %cst_28 = arith.constant 1.000000e+00 : f32
    %146 = vector.broadcast %cst_28 : f32 to vector<8x32xf32>
    %147 = arith.addf %146, %145 : vector<8x32xf32>
    %148 = arith.divf %146, %147 : vector<8x32xf32>
    %149 = vector.extract_strided_slice %129 {offsets = [0, 64], sizes = [8, 32], strides = [1, 1]} : vector<8x96xf32> to vector<8x32xf32>
    %150 = vector.extract_strided_slice %132 {offsets = [0, 64], sizes = [8, 32], strides = [1, 1]} : vector<8x96xf32> to vector<8x32xf32>
    %151 = arith.mulf %140, %150 : vector<8x32xf32>
    %152 = arith.addf %149, %151 : vector<8x32xf32>
    %153 = math.tanh %152 : vector<8x32xf32>
    %cst_29 = arith.constant 1.000000e+00 : f32
    %154 = vector.broadcast %cst_29 : f32 to vector<8x32xf32>
    %155 = arith.subf %154, %148 : vector<8x32xf32>
    %156 = arith.mulf %155, %153 : vector<8x32xf32>
    %157 = arith.mulf %148, %128 : vector<8x32xf32>
    %158 = arith.addf %156, %157 : vector<8x32xf32>
    %159 = vector.extract_strided_slice %7 {offsets = [40, 0], sizes = [8, 96], strides = [1, 1]} : vector<64x96xf32> to vector<8x96xf32>
    %cst_30 = arith.constant dense<0.000000e+00> : vector<8x96xf32>
    %160 = tpu.matmul %158, %2, %cst_30 {dimension_numbers = #tpu.dot_dimension_numbers<[1], [0], [0], [1], [0, 0, 1, 1], [], []>} : vector<8x32xf32>, vector<32x96xf32>, vector<8x96xf32> -> vector<8x96xf32>
    %161 = vector.broadcast %4 : vector<1x96xf32> to vector<8x96xf32>
    %162 = arith.addf %160, %161 : vector<8x96xf32>
    %163 = vector.extract_strided_slice %159 {offsets = [0, 0], sizes = [8, 32], strides = [1, 1]} : vector<8x96xf32> to vector<8x32xf32>
    %164 = vector.extract_strided_slice %162 {offsets = [0, 0], sizes = [8, 32], strides = [1, 1]} : vector<8x96xf32> to vector<8x32xf32>
    %165 = arith.addf %163, %164 : vector<8x32xf32>
    %166 = arith.negf %165 : vector<8x32xf32>
    %167 = math.exp %166 : vector<8x32xf32>
    %cst_31 = arith.constant 1.000000e+00 : f32
    %168 = vector.broadcast %cst_31 : f32 to vector<8x32xf32>
    %169 = arith.addf %168, %167 : vector<8x32xf32>
    %170 = arith.divf %168, %169 : vector<8x32xf32>
    %171 = vector.extract_strided_slice %159 {offsets = [0, 32], sizes = [8, 32], strides = [1, 1]} : vector<8x96xf32> to vector<8x32xf32>
    %172 = vector.extract_strided_slice %162 {offsets = [0, 32], sizes = [8, 32], strides = [1, 1]} : vector<8x96xf32> to vector<8x32xf32>
    %173 = arith.addf %171, %172 : vector<8x32xf32>
    %174 = arith.negf %173 : vector<8x32xf32>
    %175 = math.exp %174 : vector<8x32xf32>
    %cst_32 = arith.constant 1.000000e+00 : f32
    %176 = vector.broadcast %cst_32 : f32 to vector<8x32xf32>
    %177 = arith.addf %176, %175 : vector<8x32xf32>
    %178 = arith.divf %176, %177 : vector<8x32xf32>
    %179 = vector.extract_strided_slice %159 {offsets = [0, 64], sizes = [8, 32], strides = [1, 1]} : vector<8x96xf32> to vector<8x32xf32>
    %180 = vector.extract_strided_slice %162 {offsets = [0, 64], sizes = [8, 32], strides = [1, 1]} : vector<8x96xf32> to vector<8x32xf32>
    %181 = arith.mulf %170, %180 : vector<8x32xf32>
    %182 = arith.addf %179, %181 : vector<8x32xf32>
    %183 = math.tanh %182 : vector<8x32xf32>
    %cst_33 = arith.constant 1.000000e+00 : f32
    %184 = vector.broadcast %cst_33 : f32 to vector<8x32xf32>
    %185 = arith.subf %184, %178 : vector<8x32xf32>
    %186 = arith.mulf %185, %183 : vector<8x32xf32>
    %187 = arith.mulf %178, %158 : vector<8x32xf32>
    %188 = arith.addf %186, %187 : vector<8x32xf32>
    %189 = vector.extract_strided_slice %7 {offsets = [48, 0], sizes = [8, 96], strides = [1, 1]} : vector<64x96xf32> to vector<8x96xf32>
    %cst_34 = arith.constant dense<0.000000e+00> : vector<8x96xf32>
    %190 = tpu.matmul %188, %2, %cst_34 {dimension_numbers = #tpu.dot_dimension_numbers<[1], [0], [0], [1], [0, 0, 1, 1], [], []>} : vector<8x32xf32>, vector<32x96xf32>, vector<8x96xf32> -> vector<8x96xf32>
    %191 = vector.broadcast %4 : vector<1x96xf32> to vector<8x96xf32>
    %192 = arith.addf %190, %191 : vector<8x96xf32>
    %193 = vector.extract_strided_slice %189 {offsets = [0, 0], sizes = [8, 32], strides = [1, 1]} : vector<8x96xf32> to vector<8x32xf32>
    %194 = vector.extract_strided_slice %192 {offsets = [0, 0], sizes = [8, 32], strides = [1, 1]} : vector<8x96xf32> to vector<8x32xf32>
    %195 = arith.addf %193, %194 : vector<8x32xf32>
    %196 = arith.negf %195 : vector<8x32xf32>
    %197 = math.exp %196 : vector<8x32xf32>
    %cst_35 = arith.constant 1.000000e+00 : f32
    %198 = vector.broadcast %cst_35 : f32 to vector<8x32xf32>
    %199 = arith.addf %198, %197 : vector<8x32xf32>
    %200 = arith.divf %198, %199 : vector<8x32xf32>
    %201 = vector.extract_strided_slice %189 {offsets = [0, 32], sizes = [8, 32], strides = [1, 1]} : vector<8x96xf32> to vector<8x32xf32>
    %202 = vector.extract_strided_slice %192 {offsets = [0, 32], sizes = [8, 32], strides = [1, 1]} : vector<8x96xf32> to vector<8x32xf32>
    %203 = arith.addf %201, %202 : vector<8x32xf32>
    %204 = arith.negf %203 : vector<8x32xf32>
    %205 = math.exp %204 : vector<8x32xf32>
    %cst_36 = arith.constant 1.000000e+00 : f32
    %206 = vector.broadcast %cst_36 : f32 to vector<8x32xf32>
    %207 = arith.addf %206, %205 : vector<8x32xf32>
    %208 = arith.divf %206, %207 : vector<8x32xf32>
    %209 = vector.extract_strided_slice %189 {offsets = [0, 64], sizes = [8, 32], strides = [1, 1]} : vector<8x96xf32> to vector<8x32xf32>
    %210 = vector.extract_strided_slice %192 {offsets = [0, 64], sizes = [8, 32], strides = [1, 1]} : vector<8x96xf32> to vector<8x32xf32>
    %211 = arith.mulf %200, %210 : vector<8x32xf32>
    %212 = arith.addf %209, %211 : vector<8x32xf32>
    %213 = math.tanh %212 : vector<8x32xf32>
    %cst_37 = arith.constant 1.000000e+00 : f32
    %214 = vector.broadcast %cst_37 : f32 to vector<8x32xf32>
    %215 = arith.subf %214, %208 : vector<8x32xf32>
    %216 = arith.mulf %215, %213 : vector<8x32xf32>
    %217 = arith.mulf %208, %188 : vector<8x32xf32>
    %218 = arith.addf %216, %217 : vector<8x32xf32>
    %219 = vector.extract_strided_slice %7 {offsets = [56, 0], sizes = [8, 96], strides = [1, 1]} : vector<64x96xf32> to vector<8x96xf32>
    %cst_38 = arith.constant dense<0.000000e+00> : vector<8x96xf32>
    %220 = tpu.matmul %218, %2, %cst_38 {dimension_numbers = #tpu.dot_dimension_numbers<[1], [0], [0], [1], [0, 0, 1, 1], [], []>} : vector<8x32xf32>, vector<32x96xf32>, vector<8x96xf32> -> vector<8x96xf32>
    %221 = vector.broadcast %4 : vector<1x96xf32> to vector<8x96xf32>
    %222 = arith.addf %220, %221 : vector<8x96xf32>
    %223 = vector.extract_strided_slice %219 {offsets = [0, 0], sizes = [8, 32], strides = [1, 1]} : vector<8x96xf32> to vector<8x32xf32>
    %224 = vector.extract_strided_slice %222 {offsets = [0, 0], sizes = [8, 32], strides = [1, 1]} : vector<8x96xf32> to vector<8x32xf32>
    %225 = arith.addf %223, %224 : vector<8x32xf32>
    %226 = arith.negf %225 : vector<8x32xf32>
    %227 = math.exp %226 : vector<8x32xf32>
    %cst_39 = arith.constant 1.000000e+00 : f32
    %228 = vector.broadcast %cst_39 : f32 to vector<8x32xf32>
    %229 = arith.addf %228, %227 : vector<8x32xf32>
    %230 = arith.divf %228, %229 : vector<8x32xf32>
    %231 = vector.extract_strided_slice %219 {offsets = [0, 32], sizes = [8, 32], strides = [1, 1]} : vector<8x96xf32> to vector<8x32xf32>
    %232 = vector.extract_strided_slice %222 {offsets = [0, 32], sizes = [8, 32], strides = [1, 1]} : vector<8x96xf32> to vector<8x32xf32>
    %233 = arith.addf %231, %232 : vector<8x32xf32>
    %234 = arith.negf %233 : vector<8x32xf32>
    %235 = math.exp %234 : vector<8x32xf32>
    %cst_40 = arith.constant 1.000000e+00 : f32
    %236 = vector.broadcast %cst_40 : f32 to vector<8x32xf32>
    %237 = arith.addf %236, %235 : vector<8x32xf32>
    %238 = arith.divf %236, %237 : vector<8x32xf32>
    %239 = vector.extract_strided_slice %219 {offsets = [0, 64], sizes = [8, 32], strides = [1, 1]} : vector<8x96xf32> to vector<8x32xf32>
    %240 = vector.extract_strided_slice %222 {offsets = [0, 64], sizes = [8, 32], strides = [1, 1]} : vector<8x96xf32> to vector<8x32xf32>
    %241 = arith.mulf %230, %240 : vector<8x32xf32>
    %242 = arith.addf %239, %241 : vector<8x32xf32>
    %243 = math.tanh %242 : vector<8x32xf32>
    %cst_41 = arith.constant 1.000000e+00 : f32
    %244 = vector.broadcast %cst_41 : f32 to vector<8x32xf32>
    %245 = arith.subf %244, %238 : vector<8x32xf32>
    %246 = arith.mulf %245, %243 : vector<8x32xf32>
    %247 = arith.mulf %238, %218 : vector<8x32xf32>
    %248 = arith.addf %246, %247 : vector<8x32xf32>
    %249 = tpu.concatenate %38, %68, %98, %128, %158, %188, %218, %248 in 0 : vector<8x32xf32>, vector<8x32xf32>, vector<8x32xf32>, vector<8x32xf32>, vector<8x32xf32>, vector<8x32xf32>, vector<8x32xf32>, vector<8x32xf32> -> vector<64x32xf32>
    %c0_42 = arith.constant 0 : index
    %c0_43 = arith.constant 0 : index
    %250 = vector.load %arg5[%c0_42, %c0_43] : memref<32x96xf32, #tpu.memory_space<vmem>>, vector<32x96xf32>
    %c0_44 = arith.constant 0 : index
    %c0_45 = arith.constant 0 : index
    %251 = vector.load %arg6[%c0_44, %c0_45] : memref<32x96xf32, #tpu.memory_space<vmem>>, vector<32x96xf32>
    %c0_46 = arith.constant 0 : index
    %c0_47 = arith.constant 0 : index
    %252 = vector.load %arg7[%c0_46, %c0_47] : memref<1x96xf32, #tpu.memory_space<vmem>>, vector<1x96xf32>
    %c0_48 = arith.constant 0 : index
    %c0_49 = arith.constant 0 : index
    %253 = vector.load %arg8[%c0_48, %c0_49] : memref<1x96xf32, #tpu.memory_space<vmem>>, vector<1x96xf32>
    %cst_50 = arith.constant dense<0.000000e+00> : vector<64x96xf32>
    %254 = tpu.matmul %249, %250, %cst_50 {dimension_numbers = #tpu.dot_dimension_numbers<[1], [0], [0], [1], [0, 0, 1, 1], [], []>} : vector<64x32xf32>, vector<32x96xf32>, vector<64x96xf32> -> vector<64x96xf32>
    %255 = vector.broadcast %252 : vector<1x96xf32> to vector<64x96xf32>
    %256 = arith.addf %254, %255 : vector<64x96xf32>
    %cst_51 = arith.constant 0.000000e+00 : f32
    %257 = vector.broadcast %cst_51 : f32 to vector<8x32xf32>
    %258 = vector.extract_strided_slice %256 {offsets = [0, 0], sizes = [8, 96], strides = [1, 1]} : vector<64x96xf32> to vector<8x96xf32>
    %cst_52 = arith.constant dense<0.000000e+00> : vector<8x96xf32>
    %259 = tpu.matmul %257, %251, %cst_52 {dimension_numbers = #tpu.dot_dimension_numbers<[1], [0], [0], [1], [0, 0, 1, 1], [], []>} : vector<8x32xf32>, vector<32x96xf32>, vector<8x96xf32> -> vector<8x96xf32>
    %260 = vector.broadcast %253 : vector<1x96xf32> to vector<8x96xf32>
    %261 = arith.addf %259, %260 : vector<8x96xf32>
    %262 = vector.extract_strided_slice %258 {offsets = [0, 0], sizes = [8, 32], strides = [1, 1]} : vector<8x96xf32> to vector<8x32xf32>
    %263 = vector.extract_strided_slice %261 {offsets = [0, 0], sizes = [8, 32], strides = [1, 1]} : vector<8x96xf32> to vector<8x32xf32>
    %264 = arith.addf %262, %263 : vector<8x32xf32>
    %265 = arith.negf %264 : vector<8x32xf32>
    %266 = math.exp %265 : vector<8x32xf32>
    %cst_53 = arith.constant 1.000000e+00 : f32
    %267 = vector.broadcast %cst_53 : f32 to vector<8x32xf32>
    %268 = arith.addf %267, %266 : vector<8x32xf32>
    %269 = arith.divf %267, %268 : vector<8x32xf32>
    %270 = vector.extract_strided_slice %258 {offsets = [0, 32], sizes = [8, 32], strides = [1, 1]} : vector<8x96xf32> to vector<8x32xf32>
    %271 = vector.extract_strided_slice %261 {offsets = [0, 32], sizes = [8, 32], strides = [1, 1]} : vector<8x96xf32> to vector<8x32xf32>
    %272 = arith.addf %270, %271 : vector<8x32xf32>
    %273 = arith.negf %272 : vector<8x32xf32>
    %274 = math.exp %273 : vector<8x32xf32>
    %cst_54 = arith.constant 1.000000e+00 : f32
    %275 = vector.broadcast %cst_54 : f32 to vector<8x32xf32>
    %276 = arith.addf %275, %274 : vector<8x32xf32>
    %277 = arith.divf %275, %276 : vector<8x32xf32>
    %278 = vector.extract_strided_slice %258 {offsets = [0, 64], sizes = [8, 32], strides = [1, 1]} : vector<8x96xf32> to vector<8x32xf32>
    %279 = vector.extract_strided_slice %261 {offsets = [0, 64], sizes = [8, 32], strides = [1, 1]} : vector<8x96xf32> to vector<8x32xf32>
    %280 = arith.mulf %269, %279 : vector<8x32xf32>
    %281 = arith.addf %278, %280 : vector<8x32xf32>
    %282 = math.tanh %281 : vector<8x32xf32>
    %cst_55 = arith.constant 1.000000e+00 : f32
    %283 = vector.broadcast %cst_55 : f32 to vector<8x32xf32>
    %284 = arith.subf %283, %277 : vector<8x32xf32>
    %285 = arith.mulf %284, %282 : vector<8x32xf32>
    %286 = arith.mulf %277, %257 : vector<8x32xf32>
    %287 = arith.addf %285, %286 : vector<8x32xf32>
    %288 = vector.extract_strided_slice %256 {offsets = [8, 0], sizes = [8, 96], strides = [1, 1]} : vector<64x96xf32> to vector<8x96xf32>
    %cst_56 = arith.constant dense<0.000000e+00> : vector<8x96xf32>
    %289 = tpu.matmul %287, %251, %cst_56 {dimension_numbers = #tpu.dot_dimension_numbers<[1], [0], [0], [1], [0, 0, 1, 1], [], []>} : vector<8x32xf32>, vector<32x96xf32>, vector<8x96xf32> -> vector<8x96xf32>
    %290 = vector.broadcast %253 : vector<1x96xf32> to vector<8x96xf32>
    %291 = arith.addf %289, %290 : vector<8x96xf32>
    %292 = vector.extract_strided_slice %288 {offsets = [0, 0], sizes = [8, 32], strides = [1, 1]} : vector<8x96xf32> to vector<8x32xf32>
    %293 = vector.extract_strided_slice %291 {offsets = [0, 0], sizes = [8, 32], strides = [1, 1]} : vector<8x96xf32> to vector<8x32xf32>
    %294 = arith.addf %292, %293 : vector<8x32xf32>
    %295 = arith.negf %294 : vector<8x32xf32>
    %296 = math.exp %295 : vector<8x32xf32>
    %cst_57 = arith.constant 1.000000e+00 : f32
    %297 = vector.broadcast %cst_57 : f32 to vector<8x32xf32>
    %298 = arith.addf %297, %296 : vector<8x32xf32>
    %299 = arith.divf %297, %298 : vector<8x32xf32>
    %300 = vector.extract_strided_slice %288 {offsets = [0, 32], sizes = [8, 32], strides = [1, 1]} : vector<8x96xf32> to vector<8x32xf32>
    %301 = vector.extract_strided_slice %291 {offsets = [0, 32], sizes = [8, 32], strides = [1, 1]} : vector<8x96xf32> to vector<8x32xf32>
    %302 = arith.addf %300, %301 : vector<8x32xf32>
    %303 = arith.negf %302 : vector<8x32xf32>
    %304 = math.exp %303 : vector<8x32xf32>
    %cst_58 = arith.constant 1.000000e+00 : f32
    %305 = vector.broadcast %cst_58 : f32 to vector<8x32xf32>
    %306 = arith.addf %305, %304 : vector<8x32xf32>
    %307 = arith.divf %305, %306 : vector<8x32xf32>
    %308 = vector.extract_strided_slice %288 {offsets = [0, 64], sizes = [8, 32], strides = [1, 1]} : vector<8x96xf32> to vector<8x32xf32>
    %309 = vector.extract_strided_slice %291 {offsets = [0, 64], sizes = [8, 32], strides = [1, 1]} : vector<8x96xf32> to vector<8x32xf32>
    %310 = arith.mulf %299, %309 : vector<8x32xf32>
    %311 = arith.addf %308, %310 : vector<8x32xf32>
    %312 = math.tanh %311 : vector<8x32xf32>
    %cst_59 = arith.constant 1.000000e+00 : f32
    %313 = vector.broadcast %cst_59 : f32 to vector<8x32xf32>
    %314 = arith.subf %313, %307 : vector<8x32xf32>
    %315 = arith.mulf %314, %312 : vector<8x32xf32>
    %316 = arith.mulf %307, %287 : vector<8x32xf32>
    %317 = arith.addf %315, %316 : vector<8x32xf32>
    %318 = vector.extract_strided_slice %256 {offsets = [16, 0], sizes = [8, 96], strides = [1, 1]} : vector<64x96xf32> to vector<8x96xf32>
    %cst_60 = arith.constant dense<0.000000e+00> : vector<8x96xf32>
    %319 = tpu.matmul %317, %251, %cst_60 {dimension_numbers = #tpu.dot_dimension_numbers<[1], [0], [0], [1], [0, 0, 1, 1], [], []>} : vector<8x32xf32>, vector<32x96xf32>, vector<8x96xf32> -> vector<8x96xf32>
    %320 = vector.broadcast %253 : vector<1x96xf32> to vector<8x96xf32>
    %321 = arith.addf %319, %320 : vector<8x96xf32>
    %322 = vector.extract_strided_slice %318 {offsets = [0, 0], sizes = [8, 32], strides = [1, 1]} : vector<8x96xf32> to vector<8x32xf32>
    %323 = vector.extract_strided_slice %321 {offsets = [0, 0], sizes = [8, 32], strides = [1, 1]} : vector<8x96xf32> to vector<8x32xf32>
    %324 = arith.addf %322, %323 : vector<8x32xf32>
    %325 = arith.negf %324 : vector<8x32xf32>
    %326 = math.exp %325 : vector<8x32xf32>
    %cst_61 = arith.constant 1.000000e+00 : f32
    %327 = vector.broadcast %cst_61 : f32 to vector<8x32xf32>
    %328 = arith.addf %327, %326 : vector<8x32xf32>
    %329 = arith.divf %327, %328 : vector<8x32xf32>
    %330 = vector.extract_strided_slice %318 {offsets = [0, 32], sizes = [8, 32], strides = [1, 1]} : vector<8x96xf32> to vector<8x32xf32>
    %331 = vector.extract_strided_slice %321 {offsets = [0, 32], sizes = [8, 32], strides = [1, 1]} : vector<8x96xf32> to vector<8x32xf32>
    %332 = arith.addf %330, %331 : vector<8x32xf32>
    %333 = arith.negf %332 : vector<8x32xf32>
    %334 = math.exp %333 : vector<8x32xf32>
    %cst_62 = arith.constant 1.000000e+00 : f32
    %335 = vector.broadcast %cst_62 : f32 to vector<8x32xf32>
    %336 = arith.addf %335, %334 : vector<8x32xf32>
    %337 = arith.divf %335, %336 : vector<8x32xf32>
    %338 = vector.extract_strided_slice %318 {offsets = [0, 64], sizes = [8, 32], strides = [1, 1]} : vector<8x96xf32> to vector<8x32xf32>
    %339 = vector.extract_strided_slice %321 {offsets = [0, 64], sizes = [8, 32], strides = [1, 1]} : vector<8x96xf32> to vector<8x32xf32>
    %340 = arith.mulf %329, %339 : vector<8x32xf32>
    %341 = arith.addf %338, %340 : vector<8x32xf32>
    %342 = math.tanh %341 : vector<8x32xf32>
    %cst_63 = arith.constant 1.000000e+00 : f32
    %343 = vector.broadcast %cst_63 : f32 to vector<8x32xf32>
    %344 = arith.subf %343, %337 : vector<8x32xf32>
    %345 = arith.mulf %344, %342 : vector<8x32xf32>
    %346 = arith.mulf %337, %317 : vector<8x32xf32>
    %347 = arith.addf %345, %346 : vector<8x32xf32>
    %348 = vector.extract_strided_slice %256 {offsets = [24, 0], sizes = [8, 96], strides = [1, 1]} : vector<64x96xf32> to vector<8x96xf32>
    %cst_64 = arith.constant dense<0.000000e+00> : vector<8x96xf32>
    %349 = tpu.matmul %347, %251, %cst_64 {dimension_numbers = #tpu.dot_dimension_numbers<[1], [0], [0], [1], [0, 0, 1, 1], [], []>} : vector<8x32xf32>, vector<32x96xf32>, vector<8x96xf32> -> vector<8x96xf32>
    %350 = vector.broadcast %253 : vector<1x96xf32> to vector<8x96xf32>
    %351 = arith.addf %349, %350 : vector<8x96xf32>
    %352 = vector.extract_strided_slice %348 {offsets = [0, 0], sizes = [8, 32], strides = [1, 1]} : vector<8x96xf32> to vector<8x32xf32>
    %353 = vector.extract_strided_slice %351 {offsets = [0, 0], sizes = [8, 32], strides = [1, 1]} : vector<8x96xf32> to vector<8x32xf32>
    %354 = arith.addf %352, %353 : vector<8x32xf32>
    %355 = arith.negf %354 : vector<8x32xf32>
    %356 = math.exp %355 : vector<8x32xf32>
    %cst_65 = arith.constant 1.000000e+00 : f32
    %357 = vector.broadcast %cst_65 : f32 to vector<8x32xf32>
    %358 = arith.addf %357, %356 : vector<8x32xf32>
    %359 = arith.divf %357, %358 : vector<8x32xf32>
    %360 = vector.extract_strided_slice %348 {offsets = [0, 32], sizes = [8, 32], strides = [1, 1]} : vector<8x96xf32> to vector<8x32xf32>
    %361 = vector.extract_strided_slice %351 {offsets = [0, 32], sizes = [8, 32], strides = [1, 1]} : vector<8x96xf32> to vector<8x32xf32>
    %362 = arith.addf %360, %361 : vector<8x32xf32>
    %363 = arith.negf %362 : vector<8x32xf32>
    %364 = math.exp %363 : vector<8x32xf32>
    %cst_66 = arith.constant 1.000000e+00 : f32
    %365 = vector.broadcast %cst_66 : f32 to vector<8x32xf32>
    %366 = arith.addf %365, %364 : vector<8x32xf32>
    %367 = arith.divf %365, %366 : vector<8x32xf32>
    %368 = vector.extract_strided_slice %348 {offsets = [0, 64], sizes = [8, 32], strides = [1, 1]} : vector<8x96xf32> to vector<8x32xf32>
    %369 = vector.extract_strided_slice %351 {offsets = [0, 64], sizes = [8, 32], strides = [1, 1]} : vector<8x96xf32> to vector<8x32xf32>
    %370 = arith.mulf %359, %369 : vector<8x32xf32>
    %371 = arith.addf %368, %370 : vector<8x32xf32>
    %372 = math.tanh %371 : vector<8x32xf32>
    %cst_67 = arith.constant 1.000000e+00 : f32
    %373 = vector.broadcast %cst_67 : f32 to vector<8x32xf32>
    %374 = arith.subf %373, %367 : vector<8x32xf32>
    %375 = arith.mulf %374, %372 : vector<8x32xf32>
    %376 = arith.mulf %367, %347 : vector<8x32xf32>
    %377 = arith.addf %375, %376 : vector<8x32xf32>
    %378 = vector.extract_strided_slice %256 {offsets = [32, 0], sizes = [8, 96], strides = [1, 1]} : vector<64x96xf32> to vector<8x96xf32>
    %cst_68 = arith.constant dense<0.000000e+00> : vector<8x96xf32>
    %379 = tpu.matmul %377, %251, %cst_68 {dimension_numbers = #tpu.dot_dimension_numbers<[1], [0], [0], [1], [0, 0, 1, 1], [], []>} : vector<8x32xf32>, vector<32x96xf32>, vector<8x96xf32> -> vector<8x96xf32>
    %380 = vector.broadcast %253 : vector<1x96xf32> to vector<8x96xf32>
    %381 = arith.addf %379, %380 : vector<8x96xf32>
    %382 = vector.extract_strided_slice %378 {offsets = [0, 0], sizes = [8, 32], strides = [1, 1]} : vector<8x96xf32> to vector<8x32xf32>
    %383 = vector.extract_strided_slice %381 {offsets = [0, 0], sizes = [8, 32], strides = [1, 1]} : vector<8x96xf32> to vector<8x32xf32>
    %384 = arith.addf %382, %383 : vector<8x32xf32>
    %385 = arith.negf %384 : vector<8x32xf32>
    %386 = math.exp %385 : vector<8x32xf32>
    %cst_69 = arith.constant 1.000000e+00 : f32
    %387 = vector.broadcast %cst_69 : f32 to vector<8x32xf32>
    %388 = arith.addf %387, %386 : vector<8x32xf32>
    %389 = arith.divf %387, %388 : vector<8x32xf32>
    %390 = vector.extract_strided_slice %378 {offsets = [0, 32], sizes = [8, 32], strides = [1, 1]} : vector<8x96xf32> to vector<8x32xf32>
    %391 = vector.extract_strided_slice %381 {offsets = [0, 32], sizes = [8, 32], strides = [1, 1]} : vector<8x96xf32> to vector<8x32xf32>
    %392 = arith.addf %390, %391 : vector<8x32xf32>
    %393 = arith.negf %392 : vector<8x32xf32>
    %394 = math.exp %393 : vector<8x32xf32>
    %cst_70 = arith.constant 1.000000e+00 : f32
    %395 = vector.broadcast %cst_70 : f32 to vector<8x32xf32>
    %396 = arith.addf %395, %394 : vector<8x32xf32>
    %397 = arith.divf %395, %396 : vector<8x32xf32>
    %398 = vector.extract_strided_slice %378 {offsets = [0, 64], sizes = [8, 32], strides = [1, 1]} : vector<8x96xf32> to vector<8x32xf32>
    %399 = vector.extract_strided_slice %381 {offsets = [0, 64], sizes = [8, 32], strides = [1, 1]} : vector<8x96xf32> to vector<8x32xf32>
    %400 = arith.mulf %389, %399 : vector<8x32xf32>
    %401 = arith.addf %398, %400 : vector<8x32xf32>
    %402 = math.tanh %401 : vector<8x32xf32>
    %cst_71 = arith.constant 1.000000e+00 : f32
    %403 = vector.broadcast %cst_71 : f32 to vector<8x32xf32>
    %404 = arith.subf %403, %397 : vector<8x32xf32>
    %405 = arith.mulf %404, %402 : vector<8x32xf32>
    %406 = arith.mulf %397, %377 : vector<8x32xf32>
    %407 = arith.addf %405, %406 : vector<8x32xf32>
    %408 = vector.extract_strided_slice %256 {offsets = [40, 0], sizes = [8, 96], strides = [1, 1]} : vector<64x96xf32> to vector<8x96xf32>
    %cst_72 = arith.constant dense<0.000000e+00> : vector<8x96xf32>
    %409 = tpu.matmul %407, %251, %cst_72 {dimension_numbers = #tpu.dot_dimension_numbers<[1], [0], [0], [1], [0, 0, 1, 1], [], []>} : vector<8x32xf32>, vector<32x96xf32>, vector<8x96xf32> -> vector<8x96xf32>
    %410 = vector.broadcast %253 : vector<1x96xf32> to vector<8x96xf32>
    %411 = arith.addf %409, %410 : vector<8x96xf32>
    %412 = vector.extract_strided_slice %408 {offsets = [0, 0], sizes = [8, 32], strides = [1, 1]} : vector<8x96xf32> to vector<8x32xf32>
    %413 = vector.extract_strided_slice %411 {offsets = [0, 0], sizes = [8, 32], strides = [1, 1]} : vector<8x96xf32> to vector<8x32xf32>
    %414 = arith.addf %412, %413 : vector<8x32xf32>
    %415 = arith.negf %414 : vector<8x32xf32>
    %416 = math.exp %415 : vector<8x32xf32>
    %cst_73 = arith.constant 1.000000e+00 : f32
    %417 = vector.broadcast %cst_73 : f32 to vector<8x32xf32>
    %418 = arith.addf %417, %416 : vector<8x32xf32>
    %419 = arith.divf %417, %418 : vector<8x32xf32>
    %420 = vector.extract_strided_slice %408 {offsets = [0, 32], sizes = [8, 32], strides = [1, 1]} : vector<8x96xf32> to vector<8x32xf32>
    %421 = vector.extract_strided_slice %411 {offsets = [0, 32], sizes = [8, 32], strides = [1, 1]} : vector<8x96xf32> to vector<8x32xf32>
    %422 = arith.addf %420, %421 : vector<8x32xf32>
    %423 = arith.negf %422 : vector<8x32xf32>
    %424 = math.exp %423 : vector<8x32xf32>
    %cst_74 = arith.constant 1.000000e+00 : f32
    %425 = vector.broadcast %cst_74 : f32 to vector<8x32xf32>
    %426 = arith.addf %425, %424 : vector<8x32xf32>
    %427 = arith.divf %425, %426 : vector<8x32xf32>
    %428 = vector.extract_strided_slice %408 {offsets = [0, 64], sizes = [8, 32], strides = [1, 1]} : vector<8x96xf32> to vector<8x32xf32>
    %429 = vector.extract_strided_slice %411 {offsets = [0, 64], sizes = [8, 32], strides = [1, 1]} : vector<8x96xf32> to vector<8x32xf32>
    %430 = arith.mulf %419, %429 : vector<8x32xf32>
    %431 = arith.addf %428, %430 : vector<8x32xf32>
    %432 = math.tanh %431 : vector<8x32xf32>
    %cst_75 = arith.constant 1.000000e+00 : f32
    %433 = vector.broadcast %cst_75 : f32 to vector<8x32xf32>
    %434 = arith.subf %433, %427 : vector<8x32xf32>
    %435 = arith.mulf %434, %432 : vector<8x32xf32>
    %436 = arith.mulf %427, %407 : vector<8x32xf32>
    %437 = arith.addf %435, %436 : vector<8x32xf32>
    %438 = vector.extract_strided_slice %256 {offsets = [48, 0], sizes = [8, 96], strides = [1, 1]} : vector<64x96xf32> to vector<8x96xf32>
    %cst_76 = arith.constant dense<0.000000e+00> : vector<8x96xf32>
    %439 = tpu.matmul %437, %251, %cst_76 {dimension_numbers = #tpu.dot_dimension_numbers<[1], [0], [0], [1], [0, 0, 1, 1], [], []>} : vector<8x32xf32>, vector<32x96xf32>, vector<8x96xf32> -> vector<8x96xf32>
    %440 = vector.broadcast %253 : vector<1x96xf32> to vector<8x96xf32>
    %441 = arith.addf %439, %440 : vector<8x96xf32>
    %442 = vector.extract_strided_slice %438 {offsets = [0, 0], sizes = [8, 32], strides = [1, 1]} : vector<8x96xf32> to vector<8x32xf32>
    %443 = vector.extract_strided_slice %441 {offsets = [0, 0], sizes = [8, 32], strides = [1, 1]} : vector<8x96xf32> to vector<8x32xf32>
    %444 = arith.addf %442, %443 : vector<8x32xf32>
    %445 = arith.negf %444 : vector<8x32xf32>
    %446 = math.exp %445 : vector<8x32xf32>
    %cst_77 = arith.constant 1.000000e+00 : f32
    %447 = vector.broadcast %cst_77 : f32 to vector<8x32xf32>
    %448 = arith.addf %447, %446 : vector<8x32xf32>
    %449 = arith.divf %447, %448 : vector<8x32xf32>
    %450 = vector.extract_strided_slice %438 {offsets = [0, 32], sizes = [8, 32], strides = [1, 1]} : vector<8x96xf32> to vector<8x32xf32>
    %451 = vector.extract_strided_slice %441 {offsets = [0, 32], sizes = [8, 32], strides = [1, 1]} : vector<8x96xf32> to vector<8x32xf32>
    %452 = arith.addf %450, %451 : vector<8x32xf32>
    %453 = arith.negf %452 : vector<8x32xf32>
    %454 = math.exp %453 : vector<8x32xf32>
    %cst_78 = arith.constant 1.000000e+00 : f32
    %455 = vector.broadcast %cst_78 : f32 to vector<8x32xf32>
    %456 = arith.addf %455, %454 : vector<8x32xf32>
    %457 = arith.divf %455, %456 : vector<8x32xf32>
    %458 = vector.extract_strided_slice %438 {offsets = [0, 64], sizes = [8, 32], strides = [1, 1]} : vector<8x96xf32> to vector<8x32xf32>
    %459 = vector.extract_strided_slice %441 {offsets = [0, 64], sizes = [8, 32], strides = [1, 1]} : vector<8x96xf32> to vector<8x32xf32>
    %460 = arith.mulf %449, %459 : vector<8x32xf32>
    %461 = arith.addf %458, %460 : vector<8x32xf32>
    %462 = math.tanh %461 : vector<8x32xf32>
    %cst_79 = arith.constant 1.000000e+00 : f32
    %463 = vector.broadcast %cst_79 : f32 to vector<8x32xf32>
    %464 = arith.subf %463, %457 : vector<8x32xf32>
    %465 = arith.mulf %464, %462 : vector<8x32xf32>
    %466 = arith.mulf %457, %437 : vector<8x32xf32>
    %467 = arith.addf %465, %466 : vector<8x32xf32>
    %468 = vector.extract_strided_slice %256 {offsets = [56, 0], sizes = [8, 96], strides = [1, 1]} : vector<64x96xf32> to vector<8x96xf32>
    %cst_80 = arith.constant dense<0.000000e+00> : vector<8x96xf32>
    %469 = tpu.matmul %467, %251, %cst_80 {dimension_numbers = #tpu.dot_dimension_numbers<[1], [0], [0], [1], [0, 0, 1, 1], [], []>} : vector<8x32xf32>, vector<32x96xf32>, vector<8x96xf32> -> vector<8x96xf32>
    %470 = vector.broadcast %253 : vector<1x96xf32> to vector<8x96xf32>
    %471 = arith.addf %469, %470 : vector<8x96xf32>
    %472 = vector.extract_strided_slice %468 {offsets = [0, 0], sizes = [8, 32], strides = [1, 1]} : vector<8x96xf32> to vector<8x32xf32>
    %473 = vector.extract_strided_slice %471 {offsets = [0, 0], sizes = [8, 32], strides = [1, 1]} : vector<8x96xf32> to vector<8x32xf32>
    %474 = arith.addf %472, %473 : vector<8x32xf32>
    %475 = arith.negf %474 : vector<8x32xf32>
    %476 = math.exp %475 : vector<8x32xf32>
    %cst_81 = arith.constant 1.000000e+00 : f32
    %477 = vector.broadcast %cst_81 : f32 to vector<8x32xf32>
    %478 = arith.addf %477, %476 : vector<8x32xf32>
    %479 = arith.divf %477, %478 : vector<8x32xf32>
    %480 = vector.extract_strided_slice %468 {offsets = [0, 32], sizes = [8, 32], strides = [1, 1]} : vector<8x96xf32> to vector<8x32xf32>
    %481 = vector.extract_strided_slice %471 {offsets = [0, 32], sizes = [8, 32], strides = [1, 1]} : vector<8x96xf32> to vector<8x32xf32>
    %482 = arith.addf %480, %481 : vector<8x32xf32>
    %483 = arith.negf %482 : vector<8x32xf32>
    %484 = math.exp %483 : vector<8x32xf32>
    %cst_82 = arith.constant 1.000000e+00 : f32
    %485 = vector.broadcast %cst_82 : f32 to vector<8x32xf32>
    %486 = arith.addf %485, %484 : vector<8x32xf32>
    %487 = arith.divf %485, %486 : vector<8x32xf32>
    %488 = vector.extract_strided_slice %468 {offsets = [0, 64], sizes = [8, 32], strides = [1, 1]} : vector<8x96xf32> to vector<8x32xf32>
    %489 = vector.extract_strided_slice %471 {offsets = [0, 64], sizes = [8, 32], strides = [1, 1]} : vector<8x96xf32> to vector<8x32xf32>
    %490 = arith.mulf %479, %489 : vector<8x32xf32>
    %491 = arith.addf %488, %490 : vector<8x32xf32>
    %492 = math.tanh %491 : vector<8x32xf32>
    %cst_83 = arith.constant 1.000000e+00 : f32
    %493 = vector.broadcast %cst_83 : f32 to vector<8x32xf32>
    %494 = arith.subf %493, %487 : vector<8x32xf32>
    %495 = arith.mulf %494, %492 : vector<8x32xf32>
    %496 = arith.mulf %487, %467 : vector<8x32xf32>
    %497 = arith.addf %495, %496 : vector<8x32xf32>
    %c0_84 = arith.constant 0 : index
    %c0_85 = arith.constant 0 : index
    %498 = vector.load %arg9[%c0_84, %c0_85] : memref<32x2xf32, #tpu.memory_space<vmem>>, vector<32x2xf32>
    %cst_86 = arith.constant dense<0.000000e+00> : vector<8x2xf32>
    %499 = tpu.matmul %497, %498, %cst_86 {dimension_numbers = #tpu.dot_dimension_numbers<[1], [0], [0], [1], [0, 0, 1, 1], [], []>} : vector<8x32xf32>, vector<32x2xf32>, vector<8x2xf32> -> vector<8x2xf32>
    %c0_87 = arith.constant 0 : index
    %c0_88 = arith.constant 0 : index
    %500 = vector.load %arg10[%c0_87, %c0_88] : memref<1x2xf32, #tpu.memory_space<vmem>>, vector<1x2xf32>
    %501 = vector.broadcast %500 : vector<1x2xf32> to vector<8x2xf32>
    %502 = arith.addf %499, %501 : vector<8x2xf32>
    %c0_89 = arith.constant 0 : index
    %c0_90 = arith.constant 0 : index
    %503 = vector.load %arg11[%c0_89, %c0_90] : memref<8x2xf32, #tpu.memory_space<vmem>>, vector<8x2xf32>
    tpu.vector_store %arg11[%c0_89, %c0_90], %502 {strides = array<i32>} : memref<8x2xf32, #tpu.memory_space<vmem>>, vector<8x2xf32>,
    return
  }
}

</mosaic_0001>

<llo_original>
// kernel: rnn_forward.1
$region0: #{rnn_forward.1}
  #allocation0 [shape = 'u32[]', space=smem, size = 0x4, offset = 0x4, fixed_abs, tag = 'smem constant byte address 0x4 - core index']
  #allocation1 [shape = 'u32[144,128]{1,0:T(1,128)}', space=vmem, size = 0x12000, scoped, tag = 'internal scratch']
  %s0 = inlined_call_operand.vmem [shape: f32[64,48], index: 0, kind: input, shape index: {}]
  %s1 = inlined_call_operand.vmem [shape: f32[48,96], index: 1, kind: input, shape index: {}]
  %s2 = inlined_call_operand.vmem [shape: f32[32,96], index: 2, kind: input, shape index: {}]
  %s3 = inlined_call_operand.vmem [shape: f32[1,96], index: 3, kind: input, shape index: {}]
  %s4 = inlined_call_operand.vmem [shape: f32[1,96], index: 4, kind: input, shape index: {}]
  %s5 = inlined_call_operand.vmem [shape: f32[32,96], index: 5, kind: input, shape index: {}]
  %s6 = inlined_call_operand.vmem [shape: f32[32,96], index: 6, kind: input, shape index: {}]
  %s7 = inlined_call_operand.vmem [shape: f32[1,96], index: 7, kind: input, shape index: {}]
  %s8 = inlined_call_operand.vmem [shape: f32[1,96], index: 8, kind: input, shape index: {}]
  %s9 = inlined_call_operand.vmem [shape: f32[32,2], index: 9, kind: input, shape index: {}]
  %s10 = inlined_call_operand.vmem [shape: f32[1,2], index: 10, kind: input, shape index: {}]
  %s11 = inlined_call_operand.vmem [shape: f32[8,2], index: 11, kind: output, shape index: {}]
  %s12 = sld [smem:[#allocation0]]
  $region54: #{rnn_forward.1} parent=0
    _
  %s14 = ssub.s32 1, %s12
  %s15 = scalar_select 0, %s14, %s12
  // Predicated region
  $region2: #{rnn_forward.1} parent=0 // pred_check
    _
  $region3: #{rnn_forward.1} parent=0 // pred_check_branch
    %17 = sbr.rel (0) target = $region5
  $region4: #{rnn_forward.1} parent=0 // pred_region
    _
  $region5: #{rnn_forward.1} parent=0 // pred_fallthru
    _
  // Predicated region
  $region6: #{rnn_forward.1} parent=0 // pred_check
    _
  $region7: #{rnn_forward.1} parent=0 // pred_check_branch
    %19 = sbr.rel (0) target = $region9
  $region8: #{rnn_forward.1} parent=0 // pred_region
    _
  $region9: #{rnn_forward.1} parent=0 // pred_fallthru
    _
  // Predicated region
  $region10: #{rnn_forward.1} parent=0 // pred_check
    _
  $region11: #{rnn_forward.1} parent=0 // pred_check_branch
    %21 = sbr.rel (0) target = $region13
  $region12: #{rnn_forward.1} parent=0 // pred_region
    _
  $region13: #{rnn_forward.1} parent=0 // pred_fallthru
    _
  // Predicated region
  $region14: #{rnn_forward.1} parent=0 // pred_check
    _
  $region15: #{rnn_forward.1} parent=0 // pred_check_branch
    %23 = sbr.rel (0) target = $region17
  $region16: #{rnn_forward.1} parent=0 // pred_region
    _
  $region17: #{rnn_forward.1} parent=0 // pred_fallthru
    _
  // Predicated region
  $region18: #{rnn_forward.1} parent=0 // pred_check
    _
  $region19: #{rnn_forward.1} parent=0 // pred_check_branch
    %25 = sbr.rel (0) target = $region21
  $region20: #{rnn_forward.1} parent=0 // pred_region
    _
  $region21: #{rnn_forward.1} parent=0 // pred_fallthru
    _
  // Predicated region
  $region22: #{rnn_forward.1} parent=0 // pred_check
    _
  $region23: #{rnn_forward.1} parent=0 // pred_check_branch
    %27 = sbr.rel (0) target = $region25
  $region24: #{rnn_forward.1} parent=0 // pred_region
    _
  $region25: #{rnn_forward.1} parent=0 // pred_fallthru
    _
  // Predicated region
  $region26: #{rnn_forward.1} parent=0 // pred_check
    _
  $region27: #{rnn_forward.1} parent=0 // pred_check_branch
    %29 = sbr.rel (0) target = $region29
  $region28: #{rnn_forward.1} parent=0 // pred_region
    _
  $region29: #{rnn_forward.1} parent=0 // pred_fallthru
    _
  // Predicated region
  $region30: #{rnn_forward.1} parent=0 // pred_check
    _
  $region31: #{rnn_forward.1} parent=0 // pred_check_branch
    %31 = sbr.rel (0) target = $region33
  $region32: #{rnn_forward.1} parent=0 // pred_region
    _
  $region33: #{rnn_forward.1} parent=0 // pred_fallthru
    _
  // Predicated region
  $region34: #{rnn_forward.1} parent=0 // pred_check
    _
  $region35: #{rnn_forward.1} parent=0 // pred_check_branch
    %33 = sbr.rel (0) target = $region37
  $region36: #{rnn_forward.1} parent=0 // pred_region
    _
  $region37: #{rnn_forward.1} parent=0 // pred_fallthru
    _
  // Predicated region
  $region38: #{rnn_forward.1} parent=0 // pred_check
    _
  $region39: #{rnn_forward.1} parent=0 // pred_check_branch
    %35 = sbr.rel (0) target = $region41
  $region40: #{rnn_forward.1} parent=0 // pred_region
    _
  $region41: #{rnn_forward.1} parent=0 // pred_fallthru
    _
  // Predicated region
  $region42: #{rnn_forward.1} parent=0 // pred_check
    _
  $region43: #{rnn_forward.1} parent=0 // pred_check_branch
    %37 = sbr.rel (0) target = $region45
  $region44: #{rnn_forward.1} parent=0 // pred_region
    _
  $region45: #{rnn_forward.1} parent=0 // pred_fallthru
    _
  %v38 = vld [vmem:[%s0] sm:$0xff]
  %v39 = vld [vmem:[%s0 + $0x8] sm:$0xff]
  %v40 = vld [vmem:[%s0 + $0x10] sm:$0xff]
  %v41 = vld [vmem:[%s0 + $0x18] sm:$0xff]
  %v42 = vld [vmem:[%s0 + $0x20] sm:$0xff]
  %v43 = vld [vmem:[%s0 + $0x28] sm:$0xff]
  %v44 = vld [vmem:[%s0 + $0x30] sm:$0xff]
  %v45 = vld [vmem:[%s0 + $0x38] sm:$0xff]
  %v46 = vld [vmem:[%s1] sm:$0xff]
  %v47 = vld [vmem:[%s1 + $0x8] sm:$0xff]
  %v48 = vld [vmem:[%s1 + $0x10] sm:$0xff]
  %v49 = vld [vmem:[%s1 + $0x18] sm:$0xff]
  %v50 = vld [vmem:[%s1 + $0x20] sm:$0xff]
  %v51 = vld [vmem:[%s1 + $0x28] sm:$0xff]
  %v52 = vld [vmem:[%s2] sm:$0xff]
  %v53 = vld [vmem:[%s2 + $0x8] sm:$0xff]
  %v54 = vld [vmem:[%s2 + $0x10] sm:$0xff]
  %v55 = vld [vmem:[%s2 + $0x18] sm:$0xff]
  %v56 = vld [vmem:[%s3] sm:$0x1]
  %v57 = vld [vmem:[%s4] sm:$0x1]
  %v59 = vlaneseq
  %v60 = vshrl.u32 %v59, 7
  %v61 = vsub.s32 0, %v60
  %v62 = vrot.slane %v56, %v61
  %vm64 = vcmask 392192
  %v66 = vsel %vm64, %v38, 0
  %v69 = vsel %vm64, %v39, 0
  %v72 = vsel %vm64, %v40, 0
  %v75 = vsel %vm64, %v41, 0
  %v78 = vsel %vm64, %v42, 0
  %v81 = vsel %vm64, %v43, 0
  %v84 = vsel %vm64, %v44, 0
  %v87 = vsel %vm64, %v45, 0
  %89 = vmatprep.subr.mxu0 0.0
  %90 = vmatpush1.msra.mxu0 0.0
  %91 = vmatprep.subr.mxu0 0.0
  %92 = vmatpush1.msra.mxu0 0.0
  %93 = vmatprep.subr.mxu0 0.0
  %94 = vmatpush1.msra.mxu0 0.0
  %95 = vmatprep.subr.mxu0 0.0
  %96 = vmatpush1.msra.mxu0 0.0
  %97 = vmatprep.subr.mxu0 0.0
  %98 = vmatpush1.msra.mxu0 0.0
  %99 = vmatprep.subr.mxu0 0.0
  %100 = vmatpush1.msra.mxu0 0.0
  %101 = vmatprep.subr.mxu0 0.0
  %102 = vmatpush1.msra.mxu0 0.0
  %103 = vmatprep.subr.mxu0 0.0
  %104 = vmatpush1.msra.mxu0 0.0
  %105 = vmatprep.subr.mxu0 0.0
  %106 = vmatpush1.msra.mxu0 0.0
  %107 = vmatprep.subr.mxu0 0.0
  %108 = vmatpush1.msra.mxu0 0.0
  %109 = vmatprep.subr.mxu0 0.0
  %110 = vmatpush1.msra.mxu0 %v51
  %111 = vmatprep.subr.mxu0 0.0
  %112 = vmatpush1.msra.mxu0 %v50
  %113 = vmatprep.subr.mxu0 0.0
  %114 = vmatpush1.msra.mxu0 %v49
  %115 = vmatprep.subr.mxu0 0.0
  %116 = vmatpush1.msra.mxu0 %v48
  %117 = vmatprep.subr.mxu0 0.0
  %118 = vmatpush1.msra.mxu0 %v47
  %119 = vmatprep.subr.mxu0 0.0
  %120 = vmatpush1.msra.mxu0 %v46
  %121 = vmatprep.subr.mxu0 0.0
  %122 = vmatpush2.msra.mxu0 0.0
  %123 = vmatprep.subr.mxu0 0.0
  %124 = vmatpush2.msra.mxu0 0.0
  %125 = vmatprep.subr.mxu0 0.0
  %126 = vmatpush2.msra.mxu0 0.0
  %127 = vmatprep.subr.mxu0 0.0
  %128 = vmatpush2.msra.mxu0 0.0
  %129 = vmatprep.subr.mxu0 0.0
  %130 = vmatpush2.msra.mxu0 0.0
  %131 = vmatprep.subr.mxu0 0.0
  %132 = vmatpush2.msra.mxu0 0.0
  %133 = vmatprep.subr.mxu0 0.0
  %134 = vmatpush2.msra.mxu0 0.0
  %135 = vmatprep.subr.mxu0 0.0
  %136 = vmatpush2.msra.mxu0 0.0
  %137 = vmatprep.subr.mxu0 0.0
  %138 = vmatpush2.msra.mxu0 0.0
  %139 = vmatprep.subr.mxu0 0.0
  %140 = vmatpush2.msra.mxu0 0.0
  %141 = vmatprep.subr.mxu0 0.0
  %142 = vmatpush2.msra.mxu0 0.0
  %143 = vmatprep.subr.mxu0 0.0
  %144 = vmatpush2.msra.mxu0 0.0
  %145 = vmatprep.subr.mxu0 0.0
  %146 = vmatpush2.msra.mxu0 0.0
  %147 = vmatprep.subr.mxu0 0.0
  %148 = vmatpush2.msra.mxu0 0.0
  %149 = vmatprep.subr.mxu0 0.0
  %150 = vmatpush2.msra.mxu0 0.0
  %151 = vmatprep.subr.mxu0 0.0
  %152 = vmatpush2.msra.mxu0 0.0
  %153 = vmatprep.mubr.f32.mxu0 0.0
  %154 = vmatmul.mubr.f32.gmra.mxu0 %v66
  %v155 = vpop.f32.mrf.mxu0
  %v156 = vadd.f32 %v62, %v155
  %v157 = vpop.f32.mrf.mxu0
  %158 = vmatprep.mubr.f32.mxu0 0.0
  %159 = vmatmul.mubr.f32.gmra.mxu0 %v69
  %v160 = vpop.f32.mrf.mxu0
  %v161 = vadd.f32 %v62, %v160
  %v162 = vpop.f32.mrf.mxu0
  %163 = vmatprep.mubr.f32.mxu0 0.0
  %164 = vmatmul.mubr.f32.gmra.mxu0 %v72
  %v165 = vpop.f32.mrf.mxu0
  %v166 = vadd.f32 %v62, %v165
  %v167 = vpop.f32.mrf.mxu0
  %168 = vmatprep.mubr.f32.mxu0 0.0
  %169 = vmatmul.mubr.f32.gmra.mxu0 %v75
  %v170 = vpop.f32.mrf.mxu0
  %v171 = vadd.f32 %v62, %v170
  %v172 = vpop.f32.mrf.mxu0
  %173 = vmatprep.mubr.f32.mxu0 0.0
  %174 = vmatmul.mubr.f32.gmra.mxu0 %v78
  %v175 = vpop.f32.mrf.mxu0
  %v176 = vadd.f32 %v62, %v175
  %v177 = vpop.f32.mrf.mxu0
  %178 = vmatprep.mubr.f32.mxu0 0.0
  %179 = vmatmul.mubr.f32.gmra.mxu0 %v81
  %v180 = vpop.f32.mrf.mxu0
  %v181 = vadd.f32 %v62, %v180
  %v182 = vpop.f32.mrf.mxu0
  %183 = vmatprep.mubr.f32.mxu0 0.0
  %184 = vmatmul.mubr.f32.gmra.mxu0 %v84
  %v185 = vpop.f32.mrf.mxu0
  %v186 = vadd.f32 %v62, %v185
  %v187 = vpop.f32.mrf.mxu0
  %188 = vmatprep.mubr.f32.mxu0 0.0
  %189 = vmatmul.mubr.f32.gmra.mxu0 %v87
  %v190 = vpop.f32.mrf.mxu0
  %v191 = vadd.f32 %v62, %v190
  %v192 = vpop.f32.mrf.mxu0
  %193 = vdwg.mxu0
  %v195 = vlaneseq
  %v196 = vshrl.u32 %v195, 7
  %v197 = vsub.s32 0, %v196
  %v198 = vrot.slane %v57, %v197
  %vm200 = vcmask 261120
  %v202 = vsel %vm200, 0.0, 0
  %204 = vmatprep.subr.mxu0 0.0
  %205 = vmatpush1.msra.mxu0 0.0
  %206 = vmatprep.subr.mxu0 0.0
  %207 = vmatpush1.msra.mxu0 0.0
  %208 = vmatprep.subr.mxu0 0.0
  %209 = vmatpush1.msra.mxu0 0.0
  %210 = vmatprep.subr.mxu0 0.0
  %211 = vmatpush1.msra.mxu0 0.0
  %212 = vmatprep.subr.mxu0 0.0
  %213 = vmatpush1.msra.mxu0 0.0
  %214 = vmatprep.subr.mxu0 0.0
  %215 = vmatpush1.msra.mxu0 0.0
  %216 = vmatprep.subr.mxu0 0.0
  %217 = vmatpush1.msra.mxu0 0.0
  %218 = vmatprep.subr.mxu0 0.0
  %219 = vmatpush1.msra.mxu0 0.0
  %220 = vmatprep.subr.mxu0 0.0
  %221 = vmatpush1.msra.mxu0 0.0
  %222 = vmatprep.subr.mxu0 0.0
  %223 = vmatpush1.msra.mxu0 0.0
  %224 = vmatprep.subr.mxu0 0.0
  %225 = vmatpush1.msra.mxu0 0.0
  %226 = vmatprep.subr.mxu0 0.0
  %227 = vmatpush1.msra.mxu0 0.0
  %228 = vmatprep.subr.mxu0 0.0
  %229 = vmatpush1.msra.mxu0 %v55
  %230 = vmatprep.subr.mxu0 0.0
  %231 = vmatpush1.msra.mxu0 %v54
  %232 = vmatprep.subr.mxu0 0.0
  %233 = vmatpush1.msra.mxu0 %v53
  %234 = vmatprep.subr.mxu0 0.0
  %235 = vmatpush1.msra.mxu0 %v52
  %236 = vmatprep.subr.mxu0 0.0
  %237 = vmatpush2.msra.mxu0 0.0
  %238 = vmatprep.subr.mxu0 0.0
  %239 = vmatpush2.msra.mxu0 0.0
  %240 = vmatprep.subr.mxu0 0.0
  %241 = vmatpush2.msra.mxu0 0.0
  %242 = vmatprep.subr.mxu0 0.0
  %243 = vmatpush2.msra.mxu0 0.0
  %244 = vmatprep.subr.mxu0 0.0
  %245 = vmatpush2.msra.mxu0 0.0
  %246 = vmatprep.subr.mxu0 0.0
  %247 = vmatpush2.msra.mxu0 0.0
  %248 = vmatprep.subr.mxu0 0.0
  %249 = vmatpush2.msra.mxu0 0.0
  %250 = vmatprep.subr.mxu0 0.0
  %251 = vmatpush2.msra.mxu0 0.0
  %252 = vmatprep.subr.mxu0 0.0
  %253 = vmatpush2.msra.mxu0 0.0
  %254 = vmatprep.subr.mxu0 0.0
  %255 = vmatpush2.msra.mxu0 0.0
  %256 = vmatprep.subr.mxu0 0.0
  %257 = vmatpush2.msra.mxu0 0.0
  %258 = vmatprep.subr.mxu0 0.0
  %259 = vmatpush2.msra.mxu0 0.0
  %260 = vmatprep.subr.mxu0 0.0
  %261 = vmatpush2.msra.mxu0 0.0
  %262 = vmatprep.subr.mxu0 0.0
  %263 = vmatpush2.msra.mxu0 0.0
  %264 = vmatprep.subr.mxu0 0.0
  %265 = vmatpush2.msra.mxu0 0.0
  %266 = vmatprep.subr.mxu0 0.0
  %267 = vmatpush2.msra.mxu0 0.0
  %268 = vmatprep.mubr.f32.mxu0 0.0
  %269 = vmatmul.mubr.f32.gmra.mxu0 %v202
  %v270 = vpop.f32.mrf.mxu0
  %v271 = vadd.f32 %v198, %v270
  %v272 = vpop.f32.mrf.mxu0
  %273 = vdwg.mxu0
  %v274 = vadd.f32 %v156, %v271
  %v275 = vxor.u32 %v274, 2147483648
  %v276 = vmul.f32 %v275, 1.442695
  %v277 = vpow.pop %v276
  %v278 = vadd.f32 %v277, 1.0
  %v279 = vrcp.pop %v278
  %v280 = vmul.f32 1.0, %v279
  %282 = vrot.lane.b32.xlu0 %v271, 64
  %v283 = vpop.permute.xlu0 %282
  %v285 = vmul.f32 %v280, %v283
  %287 = vrot.lane.b32.xlu0 %v285, 64
  %v288 = vpop.permute.xlu0 %287
  %v290 = vadd.f32 %v156, %v288
  %v291 = vtanh.pop %v290
  %v292 = vsub.f32 1.0, %v280
  %294 = vrot.lane.b32.xlu0 %v291, 96
  %v295 = vpop.permute.xlu0 %294
  %v297 = vmul.f32 %v292, %v295
  %v298 = vmul.f32 %v280, 0.0
  %v299 = vadd.f32 %v297, %v298
  %301 = vrot.lane.b32.xlu0 %v299, 96
  %v302 = vpop.permute.xlu0 %301
  %v303 = vsel %vm200, %v302, 0
  %305 = vmatprep.subr.mxu0 0.0
  %306 = vmatpush1.msra.mxu0 0.0
  %307 = vmatprep.subr.mxu0 0.0
  %308 = vmatpush1.msra.mxu0 0.0
  %309 = vmatprep.subr.mxu0 0.0
  %310 = vmatpush1.msra.mxu0 0.0
  %311 = vmatprep.subr.mxu0 0.0
  %312 = vmatpush1.msra.mxu0 0.0
  %313 = vmatprep.subr.mxu0 0.0
  %314 = vmatpush1.msra.mxu0 0.0
  %315 = vmatprep.subr.mxu0 0.0
  %316 = vmatpush1.msra.mxu0 0.0
  %317 = vmatprep.subr.mxu0 0.0
  %318 = vmatpush1.msra.mxu0 0.0
  %319 = vmatprep.subr.mxu0 0.0
  %320 = vmatpush1.msra.mxu0 0.0
  %321 = vmatprep.subr.mxu0 0.0
  %322 = vmatpush1.msra.mxu0 0.0
  %323 = vmatprep.subr.mxu0 0.0
  %324 = vmatpush1.msra.mxu0 0.0
  %325 = vmatprep.subr.mxu0 0.0
  %326 = vmatpush1.msra.mxu0 0.0
  %327 = vmatprep.subr.mxu0 0.0
  %328 = vmatpush1.msra.mxu0 0.0
  %329 = vmatprep.subr.mxu0 0.0
  %330 = vmatpush1.msra.mxu0 %v55
  %331 = vmatprep.subr.mxu0 0.0
  %332 = vmatpush1.msra.mxu0 %v54
  %333 = vmatprep.subr.mxu0 0.0
  %334 = vmatpush1.msra.mxu0 %v53
  %335 = vmatprep.subr.mxu0 0.0
  %336 = vmatpush1.msra.mxu0 %v52
  %337 = vmatprep.subr.mxu0 0.0
  %338 = vmatpush2.msra.mxu0 0.0
  %339 = vmatprep.subr.mxu0 0.0
  %340 = vmatpush2.msra.mxu0 0.0
  %341 = vmatprep.subr.mxu0 0.0
  %342 = vmatpush2.msra.mxu0 0.0
  %343 = vmatprep.subr.mxu0 0.0
  %344 = vmatpush2.msra.mxu0 0.0
  %345 = vmatprep.subr.mxu0 0.0
  %346 = vmatpush2.msra.mxu0 0.0
  %347 = vmatprep.subr.mxu0 0.0
  %348 = vmatpush2.msra.mxu0 0.0
  %349 = vmatprep.subr.mxu0 0.0
  %350 = vmatpush2.msra.mxu0 0.0
  %351 = vmatprep.subr.mxu0 0.0
  %352 = vmatpush2.msra.mxu0 0.0
  %353 = vmatprep.subr.mxu0 0.0
  %354 = vmatpush2.msra.mxu0 0.0
  %355 = vmatprep.subr.mxu0 0.0
  %356 = vmatpush2.msra.mxu0 0.0
  %357 = vmatprep.subr.mxu0 0.0
  %358 = vmatpush2.msra.mxu0 0.0
  %359 = vmatprep.subr.mxu0 0.0
  %360 = vmatpush2.msra.mxu0 0.0
  %361 = vmatprep.subr.mxu0 0.0
  %362 = vmatpush2.msra.mxu0 0.0
  %363 = vmatprep.subr.mxu0 0.0
  %364 = vmatpush2.msra.mxu0 0.0
  %365 = vmatprep.subr.mxu0 0.0
  %366 = vmatpush2.msra.mxu0 0.0
  %367 = vmatprep.subr.mxu0 0.0
  %368 = vmatpush2.msra.mxu0 0.0
  %369 = vmatprep.mubr.f32.mxu0 0.0
  %370 = vmatmul.mubr.f32.gmra.mxu0 %v303
  %v371 = vpop.f32.mrf.mxu0
  %v372 = vadd.f32 %v198, %v371
  %v373 = vpop.f32.mrf.mxu0
  %374 = vdwg.mxu0
  %v375 = vadd.f32 %v161, %v372
  %v376 = vxor.u32 %v375, 2147483648
  %v377 = vmul.f32 %v376, 1.442695
  %v378 = vpow.pop %v377
  %v379 = vadd.f32 %v378, 1.0
  %v380 = vrcp.pop %v379
  %v381 = vmul.f32 1.0, %v380
  %383 = vrot.lane.b32.xlu0 %v372, 64
  %v384 = vpop.permute.xlu0 %383
  %v386 = vmul.f32 %v381, %v384
  %388 = vrot.lane.b32.xlu0 %v386, 64
  %v389 = vpop.permute.xlu0 %388
  %v391 = vadd.f32 %v161, %v389
  %v392 = vtanh.pop %v391
  %v393 = vsub.f32 1.0, %v381
  %395 = vrot.lane.b32.xlu0 %v392, 96
  %v396 = vpop.permute.xlu0 %395
  %v398 = vmul.f32 %v393, %v396
  %v399 = vmul.f32 %v381, %v299
  %v400 = vadd.f32 %v398, %v399
  %402 = vrot.lane.b32.xlu0 %v400, 96
  %v403 = vpop.permute.xlu0 %402
  %v404 = vsel %vm200, %v403, 0
  %406 = vmatprep.subr.mxu0 0.0
  %407 = vmatpush1.msra.mxu0 0.0
  %408 = vmatprep.subr.mxu0 0.0
  %409 = vmatpush1.msra.mxu0 0.0
  %410 = vmatprep.subr.mxu0 0.0
  %411 = vmatpush1.msra.mxu0 0.0
  %412 = vmatprep.subr.mxu0 0.0
  %413 = vmatpush1.msra.mxu0 0.0
  %414 = vmatprep.subr.mxu0 0.0
  %415 = vmatpush1.msra.mxu0 0.0
  %416 = vmatprep.subr.mxu0 0.0
  %417 = vmatpush1.msra.mxu0 0.0
  %418 = vmatprep.subr.mxu0 0.0
  %419 = vmatpush1.msra.mxu0 0.0
  %420 = vmatprep.subr.mxu0 0.0
  %421 = vmatpush1.msra.mxu0 0.0
  %422 = vmatprep.subr.mxu0 0.0
  %423 = vmatpush1.msra.mxu0 0.0
  %424 = vmatprep.subr.mxu0 0.0
  %425 = vmatpush1.msra.mxu0 0.0
  %426 = vmatprep.subr.mxu0 0.0
  %427 = vmatpush1.msra.mxu0 0.0
  %428 = vmatprep.subr.mxu0 0.0
  %429 = vmatpush1.msra.mxu0 0.0
  %430 = vmatprep.subr.mxu0 0.0
  %431 = vmatpush1.msra.mxu0 %v55
  %432 = vmatprep.subr.mxu0 0.0
  %433 = vmatpush1.msra.mxu0 %v54
  %434 = vmatprep.subr.mxu0 0.0
  %435 = vmatpush1.msra.mxu0 %v53
  %436 = vmatprep.subr.mxu0 0.0
  %437 = vmatpush1.msra.mxu0 %v52
  %438 = vmatprep.subr.mxu0 0.0
  %439 = vmatpush2.msra.mxu0 0.0
  %440 = vmatprep.subr.mxu0 0.0
  %441 = vmatpush2.msra.mxu0 0.0
  %442 = vmatprep.subr.mxu0 0.0
  %443 = vmatpush2.msra.mxu0 0.0
  %444 = vmatprep.subr.mxu0 0.0
  %445 = vmatpush2.msra.mxu0 0.0
  %446 = vmatprep.subr.mxu0 0.0
  %447 = vmatpush2.msra.mxu0 0.0
  %448 = vmatprep.subr.mxu0 0.0
  %449 = vmatpush2.msra.mxu0 0.0
  %450 = vmatprep.subr.mxu0 0.0
  %451 = vmatpush2.msra.mxu0 0.0
  %452 = vmatprep.subr.mxu0 0.0
  %453 = vmatpush2.msra.mxu0 0.0
  %454 = vmatprep.subr.mxu0 0.0
  %455 = vmatpush2.msra.mxu0 0.0
  %456 = vmatprep.subr.mxu0 0.0
  %457 = vmatpush2.msra.mxu0 0.0
  %458 = vmatprep.subr.mxu0 0.0
  %459 = vmatpush2.msra.mxu0 0.0
  %460 = vmatprep.subr.mxu0 0.0
  %461 = vmatpush2.msra.mxu0 0.0
  %462 = vmatprep.subr.mxu0 0.0
  %463 = vmatpush2.msra.mxu0 0.0
  %464 = vmatprep.subr.mxu0 0.0
  %465 = vmatpush2.msra.mxu0 0.0
  %466 = vmatprep.subr.mxu0 0.0
  %467 = vmatpush2.msra.mxu0 0.0
  %468 = vmatprep.subr.mxu0 0.0
  %469 = vmatpush2.msra.mxu0 0.0
  %470 = vmatprep.mubr.f32.mxu0 0.0
  %471 = vmatmul.mubr.f32.gmra.mxu0 %v404
  %v472 = vpop.f32.mrf.mxu0
  %v473 = vadd.f32 %v198, %v472
  %v474 = vpop.f32.mrf.mxu0
  %475 = vdwg.mxu0
  %v476 = vadd.f32 %v166, %v473
  %v477 = vxor.u32 %v476, 2147483648
  %v478 = vmul.f32 %v477, 1.442695
  %v479 = vpow.pop %v478
  %v480 = vadd.f32 %v479, 1.0
  %v481 = vrcp.pop %v480
  %v482 = vmul.f32 1.0, %v481
  %484 = vrot.lane.b32.xlu0 %v473, 64
  %v485 = vpop.permute.xlu0 %484
  %v487 = vmul.f32 %v482, %v485
  %489 = vrot.lane.b32.xlu0 %v487, 64
  %v490 = vpop.permute.xlu0 %489
  %v492 = vadd.f32 %v166, %v490
  %v493 = vtanh.pop %v492
  %v494 = vsub.f32 1.0, %v482
  %496 = vrot.lane.b32.xlu0 %v493, 96
  %v497 = vpop.permute.xlu0 %496
  %v499 = vmul.f32 %v494, %v497
  %v500 = vmul.f32 %v482, %v400
  %v501 = vadd.f32 %v499, %v500
  %503 = vrot.lane.b32.xlu0 %v501, 96
  %v504 = vpop.permute.xlu0 %503
  %v505 = vsel %vm200, %v504, 0
  %507 = vmatprep.subr.mxu0 0.0
  %508 = vmatpush1.msra.mxu0 0.0
  %509 = vmatprep.subr.mxu0 0.0
  %510 = vmatpush1.msra.mxu0 0.0
  %511 = vmatprep.subr.mxu0 0.0
  %512 = vmatpush1.msra.mxu0 0.0
  %513 = vmatprep.subr.mxu0 0.0
  %514 = vmatpush1.msra.mxu0 0.0
  %515 = vmatprep.subr.mxu0 0.0
  %516 = vmatpush1.msra.mxu0 0.0
  %517 = vmatprep.subr.mxu0 0.0
  %518 = vmatpush1.msra.mxu0 0.0
  %519 = vmatprep.subr.mxu0 0.0
  %520 = vmatpush1.msra.mxu0 0.0
  %521 = vmatprep.subr.mxu0 0.0
  %522 = vmatpush1.msra.mxu0 0.0
  %523 = vmatprep.subr.mxu0 0.0
  %524 = vmatpush1.msra.mxu0 0.0
  %525 = vmatprep.subr.mxu0 0.0
  %526 = vmatpush1.msra.mxu0 0.0
  %527 = vmatprep.subr.mxu0 0.0
  %528 = vmatpush1.msra.mxu0 0.0
  %529 = vmatprep.subr.mxu0 0.0
  %530 = vmatpush1.msra.mxu0 0.0
  %531 = vmatprep.subr.mxu0 0.0
  %532 = vmatpush1.msra.mxu0 %v55
  %533 = vmatprep.subr.mxu0 0.0
  %534 = vmatpush1.msra.mxu0 %v54
  %535 = vmatprep.subr.mxu0 0.0
  %536 = vmatpush1.msra.mxu0 %v53
  %537 = vmatprep.subr.mxu0 0.0
  %538 = vmatpush1.msra.mxu0 %v52
  %539 = vmatprep.subr.mxu0 0.0
  %540 = vmatpush2.msra.mxu0 0.0
  %541 = vmatprep.subr.mxu0 0.0
  %542 = vmatpush2.msra.mxu0 0.0
  %543 = vmatprep.subr.mxu0 0.0
  %544 = vmatpush2.msra.mxu0 0.0
  %545 = vmatprep.subr.mxu0 0.0
  %546 = vmatpush2.msra.mxu0 0.0
  %547 = vmatprep.subr.mxu0 0.0
  %548 = vmatpush2.msra.mxu0 0.0
  %549 = vmatprep.subr.mxu0 0.0
  %550 = vmatpush2.msra.mxu0 0.0
  %551 = vmatprep.subr.mxu0 0.0
  %552 = vmatpush2.msra.mxu0 0.0
  %553 = vmatprep.subr.mxu0 0.0
  %554 = vmatpush2.msra.mxu0 0.0
  %555 = vmatprep.subr.mxu0 0.0
  %556 = vmatpush2.msra.mxu0 0.0
  %557 = vmatprep.subr.mxu0 0.0
  %558 = vmatpush2.msra.mxu0 0.0
  %559 = vmatprep.subr.mxu0 0.0
  %560 = vmatpush2.msra.mxu0 0.0
  %561 = vmatprep.subr.mxu0 0.0
  %562 = vmatpush2.msra.mxu0 0.0
  %563 = vmatprep.subr.mxu0 0.0
  %564 = vmatpush2.msra.mxu0 0.0
  %565 = vmatprep.subr.mxu0 0.0
  %566 = vmatpush2.msra.mxu0 0.0
  %567 = vmatprep.subr.mxu0 0.0
  %568 = vmatpush2.msra.mxu0 0.0
  %569 = vmatprep.subr.mxu0 0.0
  %570 = vmatpush2.msra.mxu0 0.0
  %571 = vmatprep.mubr.f32.mxu0 0.0
  %572 = vmatmul.mubr.f32.gmra.mxu0 %v505
  %v573 = vpop.f32.mrf.mxu0
  %v574 = vadd.f32 %v198, %v573
  %v575 = vpop.f32.mrf.mxu0
  %576 = vdwg.mxu0
  %v577 = vadd.f32 %v171, %v574
  %v578 = vxor.u32 %v577, 2147483648
  %v579 = vmul.f32 %v578, 1.442695
  %v580 = vpow.pop %v579
  %v581 = vadd.f32 %v580, 1.0
  %v582 = vrcp.pop %v581
  %v583 = vmul.f32 1.0, %v582
  %585 = vrot.lane.b32.xlu0 %v574, 64
  %v586 = vpop.permute.xlu0 %585
  %v588 = vmul.f32 %v583, %v586
  %590 = vrot.lane.b32.xlu0 %v588, 64
  %v591 = vpop.permute.xlu0 %590
  %v593 = vadd.f32 %v171, %v591
  %v594 = vtanh.pop %v593
  %v595 = vsub.f32 1.0, %v583
  %597 = vrot.lane.b32.xlu0 %v594, 96
  %v598 = vpop.permute.xlu0 %597
  %v600 = vmul.f32 %v595, %v598
  %v601 = vmul.f32 %v583, %v501
  %v602 = vadd.f32 %v600, %v601
  %604 = vrot.lane.b32.xlu0 %v602, 96
  %v605 = vpop.permute.xlu0 %604
  %v606 = vsel %vm200, %v605, 0
  %608 = vmatprep.subr.mxu0 0.0
  %609 = vmatpush1.msra.mxu0 0.0
  %610 = vmatprep.subr.mxu0 0.0
  %611 = vmatpush1.msra.mxu0 0.0
  %612 = vmatprep.subr.mxu0 0.0
  %613 = vmatpush1.msra.mxu0 0.0
  %614 = vmatprep.subr.mxu0 0.0
  %615 = vmatpush1.msra.mxu0 0.0
  %616 = vmatprep.subr.mxu0 0.0
  %617 = vmatpush1.msra.mxu0 0.0
  %618 = vmatprep.subr.mxu0 0.0
  %619 = vmatpush1.msra.mxu0 0.0
  %620 = vmatprep.subr.mxu0 0.0
  %621 = vmatpush1.msra.mxu0 0.0
  %622 = vmatprep.subr.mxu0 0.0
  %623 = vmatpush1.msra.mxu0 0.0
  %624 = vmatprep.subr.mxu0 0.0
  %625 = vmatpush1.msra.mxu0 0.0
  %626 = vmatprep.subr.mxu0 0.0
  %627 = vmatpush1.msra.mxu0 0.0
  %628 = vmatprep.subr.mxu0 0.0
  %629 = vmatpush1.msra.mxu0 0.0
  %630 = vmatprep.subr.mxu0 0.0
  %631 = vmatpush1.msra.mxu0 0.0
  %632 = vmatprep.subr.mxu0 0.0
  %633 = vmatpush1.msra.mxu0 %v55
  %634 = vmatprep.subr.mxu0 0.0
  %635 = vmatpush1.msra.mxu0 %v54
  %636 = vmatprep.subr.mxu0 0.0
  %637 = vmatpush1.msra.mxu0 %v53
  %638 = vmatprep.subr.mxu0 0.0
  %639 = vmatpush1.msra.mxu0 %v52
  %640 = vmatprep.subr.mxu0 0.0
  %641 = vmatpush2.msra.mxu0 0.0
  %642 = vmatprep.subr.mxu0 0.0
  %643 = vmatpush2.msra.mxu0 0.0
  %644 = vmatprep.subr.mxu0 0.0
  %645 = vmatpush2.msra.mxu0 0.0
  %646 = vmatprep.subr.mxu0 0.0
  %647 = vmatpush2.msra.mxu0 0.0
  %648 = vmatprep.subr.mxu0 0.0
  %649 = vmatpush2.msra.mxu0 0.0
  %650 = vmatprep.subr.mxu0 0.0
  %651 = vmatpush2.msra.mxu0 0.0
  %652 = vmatprep.subr.mxu0 0.0
  %653 = vmatpush2.msra.mxu0 0.0
  %654 = vmatprep.subr.mxu0 0.0
  %655 = vmatpush2.msra.mxu0 0.0
  %656 = vmatprep.subr.mxu0 0.0
  %657 = vmatpush2.msra.mxu0 0.0
  %658 = vmatprep.subr.mxu0 0.0
  %659 = vmatpush2.msra.mxu0 0.0
  %660 = vmatprep.subr.mxu0 0.0
  %661 = vmatpush2.msra.mxu0 0.0
  %662 = vmatprep.subr.mxu0 0.0
  %663 = vmatpush2.msra.mxu0 0.0
  %664 = vmatprep.subr.mxu0 0.0
  %665 = vmatpush2.msra.mxu0 0.0
  %666 = vmatprep.subr.mxu0 0.0
  %667 = vmatpush2.msra.mxu0 0.0
  %668 = vmatprep.subr.mxu0 0.0
  %669 = vmatpush2.msra.mxu0 0.0
  %670 = vmatprep.subr.mxu0 0.0
  %671 = vmatpush2.msra.mxu0 0.0
  %672 = vmatprep.mubr.f32.mxu0 0.0
  %673 = vmatmul.mubr.f32.gmra.mxu0 %v606
  %v674 = vpop.f32.mrf.mxu0
  %v675 = vadd.f32 %v198, %v674
  %v676 = vpop.f32.mrf.mxu0
  %677 = vdwg.mxu0
  %v678 = vadd.f32 %v176, %v675
  %v679 = vxor.u32 %v678, 2147483648
  %v680 = vmul.f32 %v679, 1.442695
  %v681 = vpow.pop %v680
  %v682 = vadd.f32 %v681, 1.0
  %v683 = vrcp.pop %v682
  %v684 = vmul.f32 1.0, %v683
  %686 = vrot.lane.b32.xlu0 %v675, 64
  %v687 = vpop.permute.xlu0 %686
  %v689 = vmul.f32 %v684, %v687
  %691 = vrot.lane.b32.xlu0 %v689, 64
  %v692 = vpop.permute.xlu0 %691
  %v694 = vadd.f32 %v176, %v692
  %v695 = vtanh.pop %v694
  %v696 = vsub.f32 1.0, %v684
  %698 = vrot.lane.b32.xlu0 %v695, 96
  %v699 = vpop.permute.xlu0 %698
  %v701 = vmul.f32 %v696, %v699
  %v702 = vmul.f32 %v684, %v602
  %v703 = vadd.f32 %v701, %v702
  %705 = vrot.lane.b32.xlu0 %v703, 96
  %v706 = vpop.permute.xlu0 %705
  %v707 = vsel %vm200, %v706, 0
  %709 = vmatprep.subr.mxu0 0.0
  %710 = vmatpush1.msra.mxu0 0.0
  %711 = vmatprep.subr.mxu0 0.0
  %712 = vmatpush1.msra.mxu0 0.0
  %713 = vmatprep.subr.mxu0 0.0
  %714 = vmatpush1.msra.mxu0 0.0
  %715 = vmatprep.subr.mxu0 0.0
  %716 = vmatpush1.msra.mxu0 0.0
  %717 = vmatprep.subr.mxu0 0.0
  %718 = vmatpush1.msra.mxu0 0.0
  %719 = vmatprep.subr.mxu0 0.0
  %720 = vmatpush1.msra.mxu0 0.0
  %721 = vmatprep.subr.mxu0 0.0
  %722 = vmatpush1.msra.mxu0 0.0
  %723 = vmatprep.subr.mxu0 0.0
  %724 = vmatpush1.msra.mxu0 0.0
  %725 = vmatprep.subr.mxu0 0.0
  %726 = vmatpush1.msra.mxu0 0.0
  %727 = vmatprep.subr.mxu0 0.0
  %728 = vmatpush1.msra.mxu0 0.0
  %729 = vmatprep.subr.mxu0 0.0
  %730 = vmatpush1.msra.mxu0 0.0
  %731 = vmatprep.subr.mxu0 0.0
  %732 = vmatpush1.msra.mxu0 0.0
  %733 = vmatprep.subr.mxu0 0.0
  %734 = vmatpush1.msra.mxu0 %v55
  %735 = vmatprep.subr.mxu0 0.0
  %736 = vmatpush1.msra.mxu0 %v54
  %737 = vmatprep.subr.mxu0 0.0
  %738 = vmatpush1.msra.mxu0 %v53
  %739 = vmatprep.subr.mxu0 0.0
  %740 = vmatpush1.msra.mxu0 %v52
  %741 = vmatprep.subr.mxu0 0.0
  %742 = vmatpush2.msra.mxu0 0.0
  %743 = vmatprep.subr.mxu0 0.0
  %744 = vmatpush2.msra.mxu0 0.0
  %745 = vmatprep.subr.mxu0 0.0
  %746 = vmatpush2.msra.mxu0 0.0
  %747 = vmatprep.subr.mxu0 0.0
  %748 = vmatpush2.msra.mxu0 0.0
  %749 = vmatprep.subr.mxu0 0.0
  %750 = vmatpush2.msra.mxu0 0.0
  %751 = vmatprep.subr.mxu0 0.0
  %752 = vmatpush2.msra.mxu0 0.0
  %753 = vmatprep.subr.mxu0 0.0
  %754 = vmatpush2.msra.mxu0 0.0
  %755 = vmatprep.subr.mxu0 0.0
  %756 = vmatpush2.msra.mxu0 0.0
  %757 = vmatprep.subr.mxu0 0.0
  %758 = vmatpush2.msra.mxu0 0.0
  %759 = vmatprep.subr.mxu0 0.0
  %760 = vmatpush2.msra.mxu0 0.0
  %761 = vmatprep.subr.mxu0 0.0
  %762 = vmatpush2.msra.mxu0 0.0
  %763 = vmatprep.subr.mxu0 0.0
  %764 = vmatpush2.msra.mxu0 0.0
  %765 = vmatprep.subr.mxu0 0.0
  %766 = vmatpush2.msra.mxu0 0.0
  %767 = vmatprep.subr.mxu0 0.0
  %768 = vmatpush2.msra.mxu0 0.0
  %769 = vmatprep.subr.mxu0 0.0
  %770 = vmatpush2.msra.mxu0 0.0
  %771 = vmatprep.subr.mxu0 0.0
  %772 = vmatpush2.msra.mxu0 0.0
  %773 = vmatprep.mubr.f32.mxu0 0.0
  %774 = vmatmul.mubr.f32.gmra.mxu0 %v707
  %v775 = vpop.f32.mrf.mxu0
  %v776 = vadd.f32 %v198, %v775
  %v777 = vpop.f32.mrf.mxu0
  %778 = vdwg.mxu0
  %v779 = vadd.f32 %v181, %v776
  %v780 = vxor.u32 %v779, 2147483648
  %v781 = vmul.f32 %v780, 1.442695
  %v782 = vpow.pop %v781
  %v783 = vadd.f32 %v782, 1.0
  %v784 = vrcp.pop %v783
  %v785 = vmul.f32 1.0, %v784
  %787 = vrot.lane.b32.xlu0 %v776, 64
  %v788 = vpop.permute.xlu0 %787
  %v790 = vmul.f32 %v785, %v788
  %792 = vrot.lane.b32.xlu0 %v790, 64
  %v793 = vpop.permute.xlu0 %792
  %v795 = vadd.f32 %v181, %v793
  %v796 = vtanh.pop %v795
  %v797 = vsub.f32 1.0, %v785
  %799 = vrot.lane.b32.xlu0 %v796, 96
  %v800 = vpop.permute.xlu0 %799
  %v802 = vmul.f32 %v797, %v800
  %v803 = vmul.f32 %v785, %v703
  %v804 = vadd.f32 %v802, %v803
  %806 = vrot.lane.b32.xlu0 %v804, 96
  %v807 = vpop.permute.xlu0 %806
  %v808 = vsel %vm200, %v807, 0
  %810 = vmatprep.subr.mxu0 0.0
  %811 = vmatpush1.msra.mxu0 0.0
  %812 = vmatprep.subr.mxu0 0.0
  %813 = vmatpush1.msra.mxu0 0.0
  %814 = vmatprep.subr.mxu0 0.0
  %815 = vmatpush1.msra.mxu0 0.0
  %816 = vmatprep.subr.mxu0 0.0
  %817 = vmatpush1.msra.mxu0 0.0
  %818 = vmatprep.subr.mxu0 0.0
  %819 = vmatpush1.msra.mxu0 0.0
  %820 = vmatprep.subr.mxu0 0.0
  %821 = vmatpush1.msra.mxu0 0.0
  %822 = vmatprep.subr.mxu0 0.0
  %823 = vmatpush1.msra.mxu0 0.0
  %824 = vmatprep.subr.mxu0 0.0
  %825 = vmatpush1.msra.mxu0 0.0
  %826 = vmatprep.subr.mxu0 0.0
  %827 = vmatpush1.msra.mxu0 0.0
  %828 = vmatprep.subr.mxu0 0.0
  %829 = vmatpush1.msra.mxu0 0.0
  %830 = vmatprep.subr.mxu0 0.0
  %831 = vmatpush1.msra.mxu0 0.0
  %832 = vmatprep.subr.mxu0 0.0
  %833 = vmatpush1.msra.mxu0 0.0
  %834 = vmatprep.subr.mxu0 0.0
  %835 = vmatpush1.msra.mxu0 %v55
  %836 = vmatprep.subr.mxu0 0.0
  %837 = vmatpush1.msra.mxu0 %v54
  %838 = vmatprep.subr.mxu0 0.0
  %839 = vmatpush1.msra.mxu0 %v53
  %840 = vmatprep.subr.mxu0 0.0
  %841 = vmatpush1.msra.mxu0 %v52
  %842 = vmatprep.subr.mxu0 0.0
  %843 = vmatpush2.msra.mxu0 0.0
  %844 = vmatprep.subr.mxu0 0.0
  %845 = vmatpush2.msra.mxu0 0.0
  %846 = vmatprep.subr.mxu0 0.0
  %847 = vmatpush2.msra.mxu0 0.0
  %848 = vmatprep.subr.mxu0 0.0
  %849 = vmatpush2.msra.mxu0 0.0
  %850 = vmatprep.subr.mxu0 0.0
  %851 = vmatpush2.msra.mxu0 0.0
  %852 = vmatprep.subr.mxu0 0.0
  %853 = vmatpush2.msra.mxu0 0.0
  %854 = vmatprep.subr.mxu0 0.0
  %855 = vmatpush2.msra.mxu0 0.0
  %856 = vmatprep.subr.mxu0 0.0
  %857 = vmatpush2.msra.mxu0 0.0
  %858 = vmatprep.subr.mxu0 0.0
  %859 = vmatpush2.msra.mxu0 0.0
  %860 = vmatprep.subr.mxu0 0.0
  %861 = vmatpush2.msra.mxu0 0.0
  %862 = vmatprep.subr.mxu0 0.0
  %863 = vmatpush2.msra.mxu0 0.0
  %864 = vmatprep.subr.mxu0 0.0
  %865 = vmatpush2.msra.mxu0 0.0
  %866 = vmatprep.subr.mxu0 0.0
  %867 = vmatpush2.msra.mxu0 0.0
  %868 = vmatprep.subr.mxu0 0.0
  %869 = vmatpush2.msra.mxu0 0.0
  %870 = vmatprep.subr.mxu0 0.0
  %871 = vmatpush2.msra.mxu0 0.0
  %872 = vmatprep.subr.mxu0 0.0
  %873 = vmatpush2.msra.mxu0 0.0
  %874 = vmatprep.mubr.f32.mxu0 0.0
  %875 = vmatmul.mubr.f32.gmra.mxu0 %v808
  %v876 = vpop.f32.mrf.mxu0
  %v877 = vadd.f32 %v198, %v876
  %v878 = vpop.f32.mrf.mxu0
  %879 = vdwg.mxu0
  %v880 = vadd.f32 %v186, %v877
  %v881 = vxor.u32 %v880, 2147483648
  %v882 = vmul.f32 %v881, 1.442695
  %v883 = vpow.pop %v882
  %v884 = vadd.f32 %v883, 1.0
  %v885 = vrcp.pop %v884
  %v886 = vmul.f32 1.0, %v885
  %888 = vrot.lane.b32.xlu0 %v877, 64
  %v889 = vpop.permute.xlu0 %888
  %v891 = vmul.f32 %v886, %v889
  %893 = vrot.lane.b32.xlu0 %v891, 64
  %v894 = vpop.permute.xlu0 %893
  %v896 = vadd.f32 %v186, %v894
  %v897 = vtanh.pop %v896
  %v898 = vsub.f32 1.0, %v886
  %900 = vrot.lane.b32.xlu0 %v897, 96
  %v901 = vpop.permute.xlu0 %900
  %v903 = vmul.f32 %v898, %v901
  %v904 = vmul.f32 %v886, %v804
  %v905 = vadd.f32 %v903, %v904
  %907 = vrot.lane.b32.xlu0 %v905, 96
  %v908 = vpop.permute.xlu0 %907
  %v909 = vsel %vm200, %v908, 0
  %911 = vmatprep.subr.mxu0 0.0
  %912 = vmatpush1.msra.mxu0 0.0
  %913 = vmatprep.subr.mxu0 0.0
  %914 = vmatpush1.msra.mxu0 0.0
  %915 = vmatprep.subr.mxu0 0.0
  %916 = vmatpush1.msra.mxu0 0.0
  %917 = vmatprep.subr.mxu0 0.0
  %918 = vmatpush1.msra.mxu0 0.0
  %919 = vmatprep.subr.mxu0 0.0
  %920 = vmatpush1.msra.mxu0 0.0
  %921 = vmatprep.subr.mxu0 0.0
  %922 = vmatpush1.msra.mxu0 0.0
  %923 = vmatprep.subr.mxu0 0.0
  %924 = vmatpush1.msra.mxu0 0.0
  %925 = vmatprep.subr.mxu0 0.0
  %926 = vmatpush1.msra.mxu0 0.0
  %927 = vmatprep.subr.mxu0 0.0
  %928 = vmatpush1.msra.mxu0 0.0
  %929 = vmatprep.subr.mxu0 0.0
  %930 = vmatpush1.msra.mxu0 0.0
  %931 = vmatprep.subr.mxu0 0.0
  %932 = vmatpush1.msra.mxu0 0.0
  %933 = vmatprep.subr.mxu0 0.0
  %934 = vmatpush1.msra.mxu0 0.0
  %935 = vmatprep.subr.mxu0 0.0
  %936 = vmatpush1.msra.mxu0 %v55
  %937 = vmatprep.subr.mxu0 0.0
  %938 = vmatpush1.msra.mxu0 %v54
  %939 = vmatprep.subr.mxu0 0.0
  %940 = vmatpush1.msra.mxu0 %v53
  %941 = vmatprep.subr.mxu0 0.0
  %942 = vmatpush1.msra.mxu0 %v52
  %943 = vmatprep.subr.mxu0 0.0
  %944 = vmatpush2.msra.mxu0 0.0
  %945 = vmatprep.subr.mxu0 0.0
  %946 = vmatpush2.msra.mxu0 0.0
  %947 = vmatprep.subr.mxu0 0.0
  %948 = vmatpush2.msra.mxu0 0.0
  %949 = vmatprep.subr.mxu0 0.0
  %950 = vmatpush2.msra.mxu0 0.0
  %951 = vmatprep.subr.mxu0 0.0
  %952 = vmatpush2.msra.mxu0 0.0
  %953 = vmatprep.subr.mxu0 0.0
  %954 = vmatpush2.msra.mxu0 0.0
  %955 = vmatprep.subr.mxu0 0.0
  %956 = vmatpush2.msra.mxu0 0.0
  %957 = vmatprep.subr.mxu0 0.0
  %958 = vmatpush2.msra.mxu0 0.0
  %959 = vmatprep.subr.mxu0 0.0
  %960 = vmatpush2.msra.mxu0 0.0
  %961 = vmatprep.subr.mxu0 0.0
  %962 = vmatpush2.msra.mxu0 0.0
  %963 = vmatprep.subr.mxu0 0.0
  %964 = vmatpush2.msra.mxu0 0.0
  %965 = vmatprep.subr.mxu0 0.0
  %966 = vmatpush2.msra.mxu0 0.0
  %967 = vmatprep.subr.mxu0 0.0
  %968 = vmatpush2.msra.mxu0 0.0
  %969 = vmatprep.subr.mxu0 0.0
  %970 = vmatpush2.msra.mxu0 0.0
  %971 = vmatprep.subr.mxu0 0.0
  %972 = vmatpush2.msra.mxu0 0.0
  %973 = vmatprep.subr.mxu0 0.0
  %974 = vmatpush2.msra.mxu0 0.0
  %975 = vmatprep.mubr.f32.mxu0 0.0
  %976 = vmatmul.mubr.f32.gmra.mxu0 %v909
  %v977 = vpop.f32.mrf.mxu0
  %v978 = vadd.f32 %v198, %v977
  %v979 = vpop.f32.mrf.mxu0
  %980 = vdwg.mxu0
  %v981 = vadd.f32 %v191, %v978
  %v982 = vxor.u32 %v981, 2147483648
  %v983 = vmul.f32 %v982, 1.442695
  %v984 = vpow.pop %v983
  %v985 = vadd.f32 %v984, 1.0
  %v986 = vrcp.pop %v985
  %v987 = vmul.f32 1.0, %v986
  %989 = vrot.lane.b32.xlu0 %v978, 64
  %v990 = vpop.permute.xlu0 %989
  %v992 = vmul.f32 %v987, %v990
  %994 = vrot.lane.b32.xlu0 %v992, 64
  %v995 = vpop.permute.xlu0 %994
  %v997 = vadd.f32 %v191, %v995
  %v998 = vtanh.pop %v997
  %v999 = vsub.f32 1.0, %v987
  %1001 = vrot.lane.b32.xlu0 %v998, 96
  %v1002 = vpop.permute.xlu0 %1001
  %v1004 = vmul.f32 %v999, %v1002
  %v1005 = vmul.f32 %v987, %v905
  %v1006 = vadd.f32 %v1004, %v1005
  %v1007 = vld [vmem:[%s5] sm:$0xff]
  %v1008 = vld [vmem:[%s5 + $0x8] sm:$0xff]
  %v1009 = vld [vmem:[%s5 + $0x10] sm:$0xff]
  %v1010 = vld [vmem:[%s5 + $0x18] sm:$0xff]
  %v1011 = vld [vmem:[%s6] sm:$0xff]
  %v1012 = vld [vmem:[%s6 + $0x8] sm:$0xff]
  %v1013 = vld [vmem:[%s6 + $0x10] sm:$0xff]
  %v1014 = vld [vmem:[%s6 + $0x18] sm:$0xff]
  %v1015 = vld [vmem:[%s7] sm:$0x1]
  %v1016 = vld [vmem:[%s8] sm:$0x1]
  %v1018 = vlaneseq
  %v1019 = vshrl.u32 %v1018, 7
  %v1020 = vsub.s32 0, %v1019
  %v1021 = vrot.slane %v1015, %v1020
  %1024 = vrot.lane.b32.xlu0 %v1006, 96
  %v1025 = vpop.permute.xlu0 %1024
  %v1026 = vsel %vm200, %v1025, 0
  %1028 = vmatprep.subr.mxu0 0.0
  %1029 = vmatpush1.msra.mxu0 0.0
  %1030 = vmatprep.subr.mxu0 0.0
  %1031 = vmatpush1.msra.mxu0 0.0
  %1032 = vmatprep.subr.mxu0 0.0
  %1033 = vmatpush1.msra.mxu0 0.0
  %1034 = vmatprep.subr.mxu0 0.0
  %1035 = vmatpush1.msra.mxu0 0.0
  %1036 = vmatprep.subr.mxu0 0.0
  %1037 = vmatpush1.msra.mxu0 0.0
  %1038 = vmatprep.subr.mxu0 0.0
  %1039 = vmatpush1.msra.mxu0 0.0
  %1040 = vmatprep.subr.mxu0 0.0
  %1041 = vmatpush1.msra.mxu0 0.0
  %1042 = vmatprep.subr.mxu0 0.0
  %1043 = vmatpush1.msra.mxu0 0.0
  %1044 = vmatprep.subr.mxu0 0.0
  %1045 = vmatpush1.msra.mxu0 0.0
  %1046 = vmatprep.subr.mxu0 0.0
  %1047 = vmatpush1.msra.mxu0 0.0
  %1048 = vmatprep.subr.mxu0 0.0
  %1049 = vmatpush1.msra.mxu0 0.0
  %1050 = vmatprep.subr.mxu0 0.0
  %1051 = vmatpush1.msra.mxu0 0.0
  %1052 = vmatprep.subr.mxu0 0.0
  %1053 = vmatpush1.msra.mxu0 %v1010
  %1054 = vmatprep.subr.mxu0 0.0
  %1055 = vmatpush1.msra.mxu0 %v1009
  %1056 = vmatprep.subr.mxu0 0.0
  %1057 = vmatpush1.msra.mxu0 %v1008
  %1058 = vmatprep.subr.mxu0 0.0
  %1059 = vmatpush1.msra.mxu0 %v1007
  %1060 = vmatprep.subr.mxu0 0.0
  %1061 = vmatpush2.msra.mxu0 0.0
  %1062 = vmatprep.subr.mxu0 0.0
  %1063 = vmatpush2.msra.mxu0 0.0
  %1064 = vmatprep.subr.mxu0 0.0
  %1065 = vmatpush2.msra.mxu0 0.0
  %1066 = vmatprep.subr.mxu0 0.0
  %1067 = vmatpush2.msra.mxu0 0.0
  %1068 = vmatprep.subr.mxu0 0.0
  %1069 = vmatpush2.msra.mxu0 0.0
  %1070 = vmatprep.subr.mxu0 0.0
  %1071 = vmatpush2.msra.mxu0 0.0
  %1072 = vmatprep.subr.mxu0 0.0
  %1073 = vmatpush2.msra.mxu0 0.0
  %1074 = vmatprep.subr.mxu0 0.0
  %1075 = vmatpush2.msra.mxu0 0.0
  %1076 = vmatprep.subr.mxu0 0.0
  %1077 = vmatpush2.msra.mxu0 0.0
  %1078 = vmatprep.subr.mxu0 0.0
  %1079 = vmatpush2.msra.mxu0 0.0
  %1080 = vmatprep.subr.mxu0 0.0
  %1081 = vmatpush2.msra.mxu0 0.0
  %1082 = vmatprep.subr.mxu0 0.0
  %1083 = vmatpush2.msra.mxu0 0.0
  %1084 = vmatprep.subr.mxu0 0.0
  %1085 = vmatpush2.msra.mxu0 0.0
  %1086 = vmatprep.subr.mxu0 0.0
  %1087 = vmatpush2.msra.mxu0 0.0
  %1088 = vmatprep.subr.mxu0 0.0
  %1089 = vmatpush2.msra.mxu0 0.0
  %1090 = vmatprep.subr.mxu0 0.0
  %1091 = vmatpush2.msra.mxu0 0.0
  %1092 = vmatprep.mubr.f32.mxu0 0.0
  %1093 = vmatmul.mubr.f32.gmra.mxu0 %v303
  %v1094 = vpop.f32.mrf.mxu0
  %v1095 = vadd.f32 %v1021, %v1094
  %v1096 = vpop.f32.mrf.mxu0
  %1097 = vmatprep.mubr.f32.mxu0 0.0
  %1098 = vmatmul.mubr.f32.gmra.mxu0 %v404
  %v1099 = vpop.f32.mrf.mxu0
  %v1100 = vadd.f32 %v1021, %v1099
  %v1101 = vpop.f32.mrf.mxu0
  %1102 = vmatprep.mubr.f32.mxu0 0.0
  %1103 = vmatmul.mubr.f32.gmra.mxu0 %v505
  %v1104 = vpop.f32.mrf.mxu0
  %v1105 = vadd.f32 %v1021, %v1104
  %v1106 = vpop.f32.mrf.mxu0
  %1107 = vmatprep.mubr.f32.mxu0 0.0
  %1108 = vmatmul.mubr.f32.gmra.mxu0 %v606
  %v1109 = vpop.f32.mrf.mxu0
  %v1110 = vadd.f32 %v1021, %v1109
  %v1111 = vpop.f32.mrf.mxu0
  %1112 = vmatprep.mubr.f32.mxu0 0.0
  %1113 = vmatmul.mubr.f32.gmra.mxu0 %v707
  %v1114 = vpop.f32.mrf.mxu0
  %v1115 = vadd.f32 %v1021, %v1114
  %v1116 = vpop.f32.mrf.mxu0
  %1117 = vmatprep.mubr.f32.mxu0 0.0
  %1118 = vmatmul.mubr.f32.gmra.mxu0 %v808
  %v1119 = vpop.f32.mrf.mxu0
  %v1120 = vadd.f32 %v1021, %v1119
  %v1121 = vpop.f32.mrf.mxu0
  %1122 = vmatprep.mubr.f32.mxu0 0.0
  %1123 = vmatmul.mubr.f32.gmra.mxu0 %v909
  %v1124 = vpop.f32.mrf.mxu0
  %v1125 = vadd.f32 %v1021, %v1124
  %v1126 = vpop.f32.mrf.mxu0
  %1127 = vmatprep.mubr.f32.mxu0 0.0
  %1128 = vmatmul.mubr.f32.gmra.mxu0 %v1026
  %v1129 = vpop.f32.mrf.mxu0
  %v1130 = vadd.f32 %v1021, %v1129
  %v1131 = vpop.f32.mrf.mxu0
  %1132 = vdwg.mxu0
  %v1134 = vlaneseq
  %v1135 = vshrl.u32 %v1134, 7
  %v1136 = vsub.s32 0, %v1135
  %v1137 = vrot.slane %v1016, %v1136
  %1139 = vmatprep.subr.mxu0 0.0
  %1140 = vmatpush1.msra.mxu0 0.0
  %1141 = vmatprep.subr.mxu0 0.0
  %1142 = vmatpush1.msra.mxu0 0.0
  %1143 = vmatprep.subr.mxu0 0.0
  %1144 = vmatpush1.msra.mxu0 0.0
  %1145 = vmatprep.subr.mxu0 0.0
  %1146 = vmatpush1.msra.mxu0 0.0
  %1147 = vmatprep.subr.mxu0 0.0
  %1148 = vmatpush1.msra.mxu0 0.0
  %1149 = vmatprep.subr.mxu0 0.0
  %1150 = vmatpush1.msra.mxu0 0.0
  %1151 = vmatprep.subr.mxu0 0.0
  %1152 = vmatpush1.msra.mxu0 0.0
  %1153 = vmatprep.subr.mxu0 0.0
  %1154 = vmatpush1.msra.mxu0 0.0
  %1155 = vmatprep.subr.mxu0 0.0
  %1156 = vmatpush1.msra.mxu0 0.0
  %1157 = vmatprep.subr.mxu0 0.0
  %1158 = vmatpush1.msra.mxu0 0.0
  %1159 = vmatprep.subr.mxu0 0.0
  %1160 = vmatpush1.msra.mxu0 0.0
  %1161 = vmatprep.subr.mxu0 0.0
  %1162 = vmatpush1.msra.mxu0 0.0
  %1163 = vmatprep.subr.mxu0 0.0
  %1164 = vmatpush1.msra.mxu0 %v1014
  %1165 = vmatprep.subr.mxu0 0.0
  %1166 = vmatpush1.msra.mxu0 %v1013
  %1167 = vmatprep.subr.mxu0 0.0
  %1168 = vmatpush1.msra.mxu0 %v1012
  %1169 = vmatprep.subr.mxu0 0.0
  %1170 = vmatpush1.msra.mxu0 %v1011
  %1171 = vmatprep.subr.mxu0 0.0
  %1172 = vmatpush2.msra.mxu0 0.0
  %1173 = vmatprep.subr.mxu0 0.0
  %1174 = vmatpush2.msra.mxu0 0.0
  %1175 = vmatprep.subr.mxu0 0.0
  %1176 = vmatpush2.msra.mxu0 0.0
  %1177 = vmatprep.subr.mxu0 0.0
  %1178 = vmatpush2.msra.mxu0 0.0
  %1179 = vmatprep.subr.mxu0 0.0
  %1180 = vmatpush2.msra.mxu0 0.0
  %1181 = vmatprep.subr.mxu0 0.0
  %1182 = vmatpush2.msra.mxu0 0.0
  %1183 = vmatprep.subr.mxu0 0.0
  %1184 = vmatpush2.msra.mxu0 0.0
  %1185 = vmatprep.subr.mxu0 0.0
  %1186 = vmatpush2.msra.mxu0 0.0
  %1187 = vmatprep.subr.mxu0 0.0
  %1188 = vmatpush2.msra.mxu0 0.0
  %1189 = vmatprep.subr.mxu0 0.0
  %1190 = vmatpush2.msra.mxu0 0.0
  %1191 = vmatprep.subr.mxu0 0.0
  %1192 = vmatpush2.msra.mxu0 0.0
  %1193 = vmatprep.subr.mxu0 0.0
  %1194 = vmatpush2.msra.mxu0 0.0
  %1195 = vmatprep.subr.mxu0 0.0
  %1196 = vmatpush2.msra.mxu0 0.0
  %1197 = vmatprep.subr.mxu0 0.0
  %1198 = vmatpush2.msra.mxu0 0.0
  %1199 = vmatprep.subr.mxu0 0.0
  %1200 = vmatpush2.msra.mxu0 0.0
  %1201 = vmatprep.subr.mxu0 0.0
  %1202 = vmatpush2.msra.mxu0 0.0
  %1203 = vmatprep.mubr.f32.mxu0 0.0
  %1204 = vmatmul.mubr.f32.gmra.mxu0 %v202
  %v1205 = vpop.f32.mrf.mxu0
  %v1206 = vadd.f32 %v1137, %v1205
  %v1207 = vpop.f32.mrf.mxu0
  %1208 = vdwg.mxu0
  %v1209 = vadd.f32 %v1095, %v1206
  %v1210 = vxor.u32 %v1209, 2147483648
  %v1211 = vmul.f32 %v1210, 1.442695
  %v1212 = vpow.pop %v1211
  %v1213 = vadd.f32 %v1212, 1.0
  %v1214 = vrcp.pop %v1213
  %v1215 = vmul.f32 1.0, %v1214
  %1217 = vrot.lane.b32.xlu0 %v1206, 64
  %v1218 = vpop.permute.xlu0 %1217
  %v1220 = vmul.f32 %v1215, %v1218
  %1222 = vrot.lane.b32.xlu0 %v1220, 64
  %v1223 = vpop.permute.xlu0 %1222
  %v1225 = vadd.f32 %v1095, %v1223
  %v1226 = vtanh.pop %v1225
  %v1227 = vsub.f32 1.0, %v1215
  %1229 = vrot.lane.b32.xlu0 %v1226, 96
  %v1230 = vpop.permute.xlu0 %1229
  %v1232 = vmul.f32 %v1227, %v1230
  %v1233 = vmul.f32 %v1215, 0.0
  %v1234 = vadd.f32 %v1232, %v1233
  %1236 = vrot.lane.b32.xlu0 %v1234, 96
  %v1237 = vpop.permute.xlu0 %1236
  %v1238 = vsel %vm200, %v1237, 0
  %1240 = vmatprep.subr.mxu0 0.0
  %1241 = vmatpush1.msra.mxu0 0.0
  %1242 = vmatprep.subr.mxu0 0.0
  %1243 = vmatpush1.msra.mxu0 0.0
  %1244 = vmatprep.subr.mxu0 0.0
  %1245 = vmatpush1.msra.mxu0 0.0
  %1246 = vmatprep.subr.mxu0 0.0
  %1247 = vmatpush1.msra.mxu0 0.0
  %1248 = vmatprep.subr.mxu0 0.0
  %1249 = vmatpush1.msra.mxu0 0.0
  %1250 = vmatprep.subr.mxu0 0.0
  %1251 = vmatpush1.msra.mxu0 0.0
  %1252 = vmatprep.subr.mxu0 0.0
  %1253 = vmatpush1.msra.mxu0 0.0
  %1254 = vmatprep.subr.mxu0 0.0
  %1255 = vmatpush1.msra.mxu0 0.0
  %1256 = vmatprep.subr.mxu0 0.0
  %1257 = vmatpush1.msra.mxu0 0.0
  %1258 = vmatprep.subr.mxu0 0.0
  %1259 = vmatpush1.msra.mxu0 0.0
  %1260 = vmatprep.subr.mxu0 0.0
  %1261 = vmatpush1.msra.mxu0 0.0
  %1262 = vmatprep.subr.mxu0 0.0
  %1263 = vmatpush1.msra.mxu0 0.0
  %1264 = vmatprep.subr.mxu0 0.0
  %1265 = vmatpush1.msra.mxu0 %v1014
  %1266 = vmatprep.subr.mxu0 0.0
  %1267 = vmatpush1.msra.mxu0 %v1013
  %1268 = vmatprep.subr.mxu0 0.0
  %1269 = vmatpush1.msra.mxu0 %v1012
  %1270 = vmatprep.subr.mxu0 0.0
  %1271 = vmatpush1.msra.mxu0 %v1011
  %1272 = vmatprep.subr.mxu0 0.0
  %1273 = vmatpush2.msra.mxu0 0.0
  %1274 = vmatprep.subr.mxu0 0.0
  %1275 = vmatpush2.msra.mxu0 0.0
  %1276 = vmatprep.subr.mxu0 0.0
  %1277 = vmatpush2.msra.mxu0 0.0
  %1278 = vmatprep.subr.mxu0 0.0
  %1279 = vmatpush2.msra.mxu0 0.0
  %1280 = vmatprep.subr.mxu0 0.0
  %1281 = vmatpush2.msra.mxu0 0.0
  %1282 = vmatprep.subr.mxu0 0.0
  %1283 = vmatpush2.msra.mxu0 0.0
  %1284 = vmatprep.subr.mxu0 0.0
  %1285 = vmatpush2.msra.mxu0 0.0
  %1286 = vmatprep.subr.mxu0 0.0
  %1287 = vmatpush2.msra.mxu0 0.0
  %1288 = vmatprep.subr.mxu0 0.0
  %1289 = vmatpush2.msra.mxu0 0.0
  %1290 = vmatprep.subr.mxu0 0.0
  %1291 = vmatpush2.msra.mxu0 0.0
  %1292 = vmatprep.subr.mxu0 0.0
  %1293 = vmatpush2.msra.mxu0 0.0
  %1294 = vmatprep.subr.mxu0 0.0
  %1295 = vmatpush2.msra.mxu0 0.0
  %1296 = vmatprep.subr.mxu0 0.0
  %1297 = vmatpush2.msra.mxu0 0.0
  %1298 = vmatprep.subr.mxu0 0.0
  %1299 = vmatpush2.msra.mxu0 0.0
  %1300 = vmatprep.subr.mxu0 0.0
  %1301 = vmatpush2.msra.mxu0 0.0
  %1302 = vmatprep.subr.mxu0 0.0
  %1303 = vmatpush2.msra.mxu0 0.0
  %1304 = vmatprep.mubr.f32.mxu0 0.0
  %1305 = vmatmul.mubr.f32.gmra.mxu0 %v1238
  %v1306 = vpop.f32.mrf.mxu0
  %v1307 = vadd.f32 %v1137, %v1306
  %v1308 = vpop.f32.mrf.mxu0
  %1309 = vdwg.mxu0
  %v1310 = vadd.f32 %v1100, %v1307
  %v1311 = vxor.u32 %v1310, 2147483648
  %v1312 = vmul.f32 %v1311, 1.442695
  %v1313 = vpow.pop %v1312
  %v1314 = vadd.f32 %v1313, 1.0
  %v1315 = vrcp.pop %v1314
  %v1316 = vmul.f32 1.0, %v1315
  %1318 = vrot.lane.b32.xlu0 %v1307, 64
  %v1319 = vpop.permute.xlu0 %1318
  %v1321 = vmul.f32 %v1316, %v1319
  %1323 = vrot.lane.b32.xlu0 %v1321, 64
  %v1324 = vpop.permute.xlu0 %1323
  %v1326 = vadd.f32 %v1100, %v1324
  %v1327 = vtanh.pop %v1326
  %v1328 = vsub.f32 1.0, %v1316
  %1330 = vrot.lane.b32.xlu0 %v1327, 96
  %v1331 = vpop.permute.xlu0 %1330
  %v1333 = vmul.f32 %v1328, %v1331
  %v1334 = vmul.f32 %v1316, %v1234
  %v1335 = vadd.f32 %v1333, %v1334
  %1337 = vrot.lane.b32.xlu0 %v1335, 96
  %v1338 = vpop.permute.xlu0 %1337
  %v1339 = vsel %vm200, %v1338, 0
  %1341 = vmatprep.subr.mxu0 0.0
  %1342 = vmatpush1.msra.mxu0 0.0
  %1343 = vmatprep.subr.mxu0 0.0
  %1344 = vmatpush1.msra.mxu0 0.0
  %1345 = vmatprep.subr.mxu0 0.0
  %1346 = vmatpush1.msra.mxu0 0.0
  %1347 = vmatprep.subr.mxu0 0.0
  %1348 = vmatpush1.msra.mxu0 0.0
  %1349 = vmatprep.subr.mxu0 0.0
  %1350 = vmatpush1.msra.mxu0 0.0
  %1351 = vmatprep.subr.mxu0 0.0
  %1352 = vmatpush1.msra.mxu0 0.0
  %1353 = vmatprep.subr.mxu0 0.0
  %1354 = vmatpush1.msra.mxu0 0.0
  %1355 = vmatprep.subr.mxu0 0.0
  %1356 = vmatpush1.msra.mxu0 0.0
  %1357 = vmatprep.subr.mxu0 0.0
  %1358 = vmatpush1.msra.mxu0 0.0
  %1359 = vmatprep.subr.mxu0 0.0
  %1360 = vmatpush1.msra.mxu0 0.0
  %1361 = vmatprep.subr.mxu0 0.0
  %1362 = vmatpush1.msra.mxu0 0.0
  %1363 = vmatprep.subr.mxu0 0.0
  %1364 = vmatpush1.msra.mxu0 0.0
  %1365 = vmatprep.subr.mxu0 0.0
  %1366 = vmatpush1.msra.mxu0 %v1014
  %1367 = vmatprep.subr.mxu0 0.0
  %1368 = vmatpush1.msra.mxu0 %v1013
  %1369 = vmatprep.subr.mxu0 0.0
  %1370 = vmatpush1.msra.mxu0 %v1012
  %1371 = vmatprep.subr.mxu0 0.0
  %1372 = vmatpush1.msra.mxu0 %v1011
  %1373 = vmatprep.subr.mxu0 0.0
  %1374 = vmatpush2.msra.mxu0 0.0
  %1375 = vmatprep.subr.mxu0 0.0
  %1376 = vmatpush2.msra.mxu0 0.0
  %1377 = vmatprep.subr.mxu0 0.0
  %1378 = vmatpush2.msra.mxu0 0.0
  %1379 = vmatprep.subr.mxu0 0.0
  %1380 = vmatpush2.msra.mxu0 0.0
  %1381 = vmatprep.subr.mxu0 0.0
  %1382 = vmatpush2.msra.mxu0 0.0
  %1383 = vmatprep.subr.mxu0 0.0
  %1384 = vmatpush2.msra.mxu0 0.0
  %1385 = vmatprep.subr.mxu0 0.0
  %1386 = vmatpush2.msra.mxu0 0.0
  %1387 = vmatprep.subr.mxu0 0.0
  %1388 = vmatpush2.msra.mxu0 0.0
  %1389 = vmatprep.subr.mxu0 0.0
  %1390 = vmatpush2.msra.mxu0 0.0
  %1391 = vmatprep.subr.mxu0 0.0
  %1392 = vmatpush2.msra.mxu0 0.0
  %1393 = vmatprep.subr.mxu0 0.0
  %1394 = vmatpush2.msra.mxu0 0.0
  %1395 = vmatprep.subr.mxu0 0.0
  %1396 = vmatpush2.msra.mxu0 0.0
  %1397 = vmatprep.subr.mxu0 0.0
  %1398 = vmatpush2.msra.mxu0 0.0
  %1399 = vmatprep.subr.mxu0 0.0
  %1400 = vmatpush2.msra.mxu0 0.0
  %1401 = vmatprep.subr.mxu0 0.0
  %1402 = vmatpush2.msra.mxu0 0.0
  %1403 = vmatprep.subr.mxu0 0.0
  %1404 = vmatpush2.msra.mxu0 0.0
  %1405 = vmatprep.mubr.f32.mxu0 0.0
  %1406 = vmatmul.mubr.f32.gmra.mxu0 %v1339
  %v1407 = vpop.f32.mrf.mxu0
  %v1408 = vadd.f32 %v1137, %v1407
  %v1409 = vpop.f32.mrf.mxu0
  %1410 = vdwg.mxu0
  %v1411 = vadd.f32 %v1105, %v1408
  %v1412 = vxor.u32 %v1411, 2147483648
  %v1413 = vmul.f32 %v1412, 1.442695
  %v1414 = vpow.pop %v1413
  %v1415 = vadd.f32 %v1414, 1.0
  %v1416 = vrcp.pop %v1415
  %v1417 = vmul.f32 1.0, %v1416
  %1419 = vrot.lane.b32.xlu0 %v1408, 64
  %v1420 = vpop.permute.xlu0 %1419
  %v1422 = vmul.f32 %v1417, %v1420
  %1424 = vrot.lane.b32.xlu0 %v1422, 64
  %v1425 = vpop.permute.xlu0 %1424
  %v1427 = vadd.f32 %v1105, %v1425
  %v1428 = vtanh.pop %v1427
  %v1429 = vsub.f32 1.0, %v1417
  %1431 = vrot.lane.b32.xlu0 %v1428, 96
  %v1432 = vpop.permute.xlu0 %1431
  %v1434 = vmul.f32 %v1429, %v1432
  %v1435 = vmul.f32 %v1417, %v1335
  %v1436 = vadd.f32 %v1434, %v1435
  %1438 = vrot.lane.b32.xlu0 %v1436, 96
  %v1439 = vpop.permute.xlu0 %1438
  %v1440 = vsel %vm200, %v1439, 0
  %1442 = vmatprep.subr.mxu0 0.0
  %1443 = vmatpush1.msra.mxu0 0.0
  %1444 = vmatprep.subr.mxu0 0.0
  %1445 = vmatpush1.msra.mxu0 0.0
  %1446 = vmatprep.subr.mxu0 0.0
  %1447 = vmatpush1.msra.mxu0 0.0
  %1448 = vmatprep.subr.mxu0 0.0
  %1449 = vmatpush1.msra.mxu0 0.0
  %1450 = vmatprep.subr.mxu0 0.0
  %1451 = vmatpush1.msra.mxu0 0.0
  %1452 = vmatprep.subr.mxu0 0.0
  %1453 = vmatpush1.msra.mxu0 0.0
  %1454 = vmatprep.subr.mxu0 0.0
  %1455 = vmatpush1.msra.mxu0 0.0
  %1456 = vmatprep.subr.mxu0 0.0
  %1457 = vmatpush1.msra.mxu0 0.0
  %1458 = vmatprep.subr.mxu0 0.0
  %1459 = vmatpush1.msra.mxu0 0.0
  %1460 = vmatprep.subr.mxu0 0.0
  %1461 = vmatpush1.msra.mxu0 0.0
  %1462 = vmatprep.subr.mxu0 0.0
  %1463 = vmatpush1.msra.mxu0 0.0
  %1464 = vmatprep.subr.mxu0 0.0
  %1465 = vmatpush1.msra.mxu0 0.0
  %1466 = vmatprep.subr.mxu0 0.0
  %1467 = vmatpush1.msra.mxu0 %v1014
  %1468 = vmatprep.subr.mxu0 0.0
  %1469 = vmatpush1.msra.mxu0 %v1013
  %1470 = vmatprep.subr.mxu0 0.0
  %1471 = vmatpush1.msra.mxu0 %v1012
  %1472 = vmatprep.subr.mxu0 0.0
  %1473 = vmatpush1.msra.mxu0 %v1011
  %1474 = vmatprep.subr.mxu0 0.0
  %1475 = vmatpush2.msra.mxu0 0.0
  %1476 = vmatprep.subr.mxu0 0.0
  %1477 = vmatpush2.msra.mxu0 0.0
  %1478 = vmatprep.subr.mxu0 0.0
  %1479 = vmatpush2.msra.mxu0 0.0
  %1480 = vmatprep.subr.mxu0 0.0
  %1481 = vmatpush2.msra.mxu0 0.0
  %1482 = vmatprep.subr.mxu0 0.0
  %1483 = vmatpush2.msra.mxu0 0.0
  %1484 = vmatprep.subr.mxu0 0.0
  %1485 = vmatpush2.msra.mxu0 0.0
  %1486 = vmatprep.subr.mxu0 0.0
  %1487 = vmatpush2.msra.mxu0 0.0
  %1488 = vmatprep.subr.mxu0 0.0
  %1489 = vmatpush2.msra.mxu0 0.0
  %1490 = vmatprep.subr.mxu0 0.0
  %1491 = vmatpush2.msra.mxu0 0.0
  %1492 = vmatprep.subr.mxu0 0.0
  %1493 = vmatpush2.msra.mxu0 0.0
  %1494 = vmatprep.subr.mxu0 0.0
  %1495 = vmatpush2.msra.mxu0 0.0
  %1496 = vmatprep.subr.mxu0 0.0
  %1497 = vmatpush2.msra.mxu0 0.0
  %1498 = vmatprep.subr.mxu0 0.0
  %1499 = vmatpush2.msra.mxu0 0.0
  %1500 = vmatprep.subr.mxu0 0.0
  %1501 = vmatpush2.msra.mxu0 0.0
  %1502 = vmatprep.subr.mxu0 0.0
  %1503 = vmatpush2.msra.mxu0 0.0
  %1504 = vmatprep.subr.mxu0 0.0
  %1505 = vmatpush2.msra.mxu0 0.0
  %1506 = vmatprep.mubr.f32.mxu0 0.0
  %1507 = vmatmul.mubr.f32.gmra.mxu0 %v1440
  %v1508 = vpop.f32.mrf.mxu0
  %v1509 = vadd.f32 %v1137, %v1508
  %v1510 = vpop.f32.mrf.mxu0
  %1511 = vdwg.mxu0
  %v1512 = vadd.f32 %v1110, %v1509
  %v1513 = vxor.u32 %v1512, 2147483648
  %v1514 = vmul.f32 %v1513, 1.442695
  %v1515 = vpow.pop %v1514
  %v1516 = vadd.f32 %v1515, 1.0
  %v1517 = vrcp.pop %v1516
  %v1518 = vmul.f32 1.0, %v1517
  %1520 = vrot.lane.b32.xlu0 %v1509, 64
  %v1521 = vpop.permute.xlu0 %1520
  %v1523 = vmul.f32 %v1518, %v1521
  %1525 = vrot.lane.b32.xlu0 %v1523, 64
  %v1526 = vpop.permute.xlu0 %1525
  %v1528 = vadd.f32 %v1110, %v1526
  %v1529 = vtanh.pop %v1528
  %v1530 = vsub.f32 1.0, %v1518
  %1532 = vrot.lane.b32.xlu0 %v1529, 96
  %v1533 = vpop.permute.xlu0 %1532
  %v1535 = vmul.f32 %v1530, %v1533
  %v1536 = vmul.f32 %v1518, %v1436
  %v1537 = vadd.f32 %v1535, %v1536
  %1539 = vrot.lane.b32.xlu0 %v1537, 96
  %v1540 = vpop.permute.xlu0 %1539
  %v1541 = vsel %vm200, %v1540, 0
  %1543 = vmatprep.subr.mxu0 0.0
  %1544 = vmatpush1.msra.mxu0 0.0
  %1545 = vmatprep.subr.mxu0 0.0
  %1546 = vmatpush1.msra.mxu0 0.0
  %1547 = vmatprep.subr.mxu0 0.0
  %1548 = vmatpush1.msra.mxu0 0.0
  %1549 = vmatprep.subr.mxu0 0.0
  %1550 = vmatpush1.msra.mxu0 0.0
  %1551 = vmatprep.subr.mxu0 0.0
  %1552 = vmatpush1.msra.mxu0 0.0
  %1553 = vmatprep.subr.mxu0 0.0
  %1554 = vmatpush1.msra.mxu0 0.0
  %1555 = vmatprep.subr.mxu0 0.0
  %1556 = vmatpush1.msra.mxu0 0.0
  %1557 = vmatprep.subr.mxu0 0.0
  %1558 = vmatpush1.msra.mxu0 0.0
  %1559 = vmatprep.subr.mxu0 0.0
  %1560 = vmatpush1.msra.mxu0 0.0
  %1561 = vmatprep.subr.mxu0 0.0
  %1562 = vmatpush1.msra.mxu0 0.0
  %1563 = vmatprep.subr.mxu0 0.0
  %1564 = vmatpush1.msra.mxu0 0.0
  %1565 = vmatprep.subr.mxu0 0.0
  %1566 = vmatpush1.msra.mxu0 0.0
  %1567 = vmatprep.subr.mxu0 0.0
  %1568 = vmatpush1.msra.mxu0 %v1014
  %1569 = vmatprep.subr.mxu0 0.0
  %1570 = vmatpush1.msra.mxu0 %v1013
  %1571 = vmatprep.subr.mxu0 0.0
  %1572 = vmatpush1.msra.mxu0 %v1012
  %1573 = vmatprep.subr.mxu0 0.0
  %1574 = vmatpush1.msra.mxu0 %v1011
  %1575 = vmatprep.subr.mxu0 0.0
  %1576 = vmatpush2.msra.mxu0 0.0
  %1577 = vmatprep.subr.mxu0 0.0
  %1578 = vmatpush2.msra.mxu0 0.0
  %1579 = vmatprep.subr.mxu0 0.0
  %1580 = vmatpush2.msra.mxu0 0.0
  %1581 = vmatprep.subr.mxu0 0.0
  %1582 = vmatpush2.msra.mxu0 0.0
  %1583 = vmatprep.subr.mxu0 0.0
  %1584 = vmatpush2.msra.mxu0 0.0
  %1585 = vmatprep.subr.mxu0 0.0
  %1586 = vmatpush2.msra.mxu0 0.0
  %1587 = vmatprep.subr.mxu0 0.0
  %1588 = vmatpush2.msra.mxu0 0.0
  %1589 = vmatprep.subr.mxu0 0.0
  %1590 = vmatpush2.msra.mxu0 0.0
  %1591 = vmatprep.subr.mxu0 0.0
  %1592 = vmatpush2.msra.mxu0 0.0
  %1593 = vmatprep.subr.mxu0 0.0
  %1594 = vmatpush2.msra.mxu0 0.0
  %1595 = vmatprep.subr.mxu0 0.0
  %1596 = vmatpush2.msra.mxu0 0.0
  %1597 = vmatprep.subr.mxu0 0.0
  %1598 = vmatpush2.msra.mxu0 0.0
  %1599 = vmatprep.subr.mxu0 0.0
  %1600 = vmatpush2.msra.mxu0 0.0
  %1601 = vmatprep.subr.mxu0 0.0
  %1602 = vmatpush2.msra.mxu0 0.0
  %1603 = vmatprep.subr.mxu0 0.0
  %1604 = vmatpush2.msra.mxu0 0.0
  %1605 = vmatprep.subr.mxu0 0.0
  %1606 = vmatpush2.msra.mxu0 0.0
  %1607 = vmatprep.mubr.f32.mxu0 0.0
  %1608 = vmatmul.mubr.f32.gmra.mxu0 %v1541
  %v1609 = vpop.f32.mrf.mxu0
  %v1610 = vadd.f32 %v1137, %v1609
  %v1611 = vpop.f32.mrf.mxu0
  %1612 = vdwg.mxu0
  %v1613 = vadd.f32 %v1115, %v1610
  %v1614 = vxor.u32 %v1613, 2147483648
  %v1615 = vmul.f32 %v1614, 1.442695
  %v1616 = vpow.pop %v1615
  %v1617 = vadd.f32 %v1616, 1.0
  %v1618 = vrcp.pop %v1617
  %v1619 = vmul.f32 1.0, %v1618
  %1621 = vrot.lane.b32.xlu0 %v1610, 64
  %v1622 = vpop.permute.xlu0 %1621
  %v1624 = vmul.f32 %v1619, %v1622
  %1626 = vrot.lane.b32.xlu0 %v1624, 64
  %v1627 = vpop.permute.xlu0 %1626
  %v1629 = vadd.f32 %v1115, %v1627
  %v1630 = vtanh.pop %v1629
  %v1631 = vsub.f32 1.0, %v1619
  %1633 = vrot.lane.b32.xlu0 %v1630, 96
  %v1634 = vpop.permute.xlu0 %1633
  %v1636 = vmul.f32 %v1631, %v1634
  %v1637 = vmul.f32 %v1619, %v1537
  %v1638 = vadd.f32 %v1636, %v1637
  %1640 = vrot.lane.b32.xlu0 %v1638, 96
  %v1641 = vpop.permute.xlu0 %1640
  %v1642 = vsel %vm200, %v1641, 0
  %1644 = vmatprep.subr.mxu0 0.0
  %1645 = vmatpush1.msra.mxu0 0.0
  %1646 = vmatprep.subr.mxu0 0.0
  %1647 = vmatpush1.msra.mxu0 0.0
  %1648 = vmatprep.subr.mxu0 0.0
  %1649 = vmatpush1.msra.mxu0 0.0
  %1650 = vmatprep.subr.mxu0 0.0
  %1651 = vmatpush1.msra.mxu0 0.0
  %1652 = vmatprep.subr.mxu0 0.0
  %1653 = vmatpush1.msra.mxu0 0.0
  %1654 = vmatprep.subr.mxu0 0.0
  %1655 = vmatpush1.msra.mxu0 0.0
  %1656 = vmatprep.subr.mxu0 0.0
  %1657 = vmatpush1.msra.mxu0 0.0
  %1658 = vmatprep.subr.mxu0 0.0
  %1659 = vmatpush1.msra.mxu0 0.0
  %1660 = vmatprep.subr.mxu0 0.0
  %1661 = vmatpush1.msra.mxu0 0.0
  %1662 = vmatprep.subr.mxu0 0.0
  %1663 = vmatpush1.msra.mxu0 0.0
  %1664 = vmatprep.subr.mxu0 0.0
  %1665 = vmatpush1.msra.mxu0 0.0
  %1666 = vmatprep.subr.mxu0 0.0
  %1667 = vmatpush1.msra.mxu0 0.0
  %1668 = vmatprep.subr.mxu0 0.0
  %1669 = vmatpush1.msra.mxu0 %v1014
  %1670 = vmatprep.subr.mxu0 0.0
  %1671 = vmatpush1.msra.mxu0 %v1013
  %1672 = vmatprep.subr.mxu0 0.0
  %1673 = vmatpush1.msra.mxu0 %v1012
  %1674 = vmatprep.subr.mxu0 0.0
  %1675 = vmatpush1.msra.mxu0 %v1011
  %1676 = vmatprep.subr.mxu0 0.0
  %1677 = vmatpush2.msra.mxu0 0.0
  %1678 = vmatprep.subr.mxu0 0.0
  %1679 = vmatpush2.msra.mxu0 0.0
  %1680 = vmatprep.subr.mxu0 0.0
  %1681 = vmatpush2.msra.mxu0 0.0
  %1682 = vmatprep.subr.mxu0 0.0
  %1683 = vmatpush2.msra.mxu0 0.0
  %1684 = vmatprep.subr.mxu0 0.0
  %1685 = vmatpush2.msra.mxu0 0.0
  %1686 = vmatprep.subr.mxu0 0.0
  %1687 = vmatpush2.msra.mxu0 0.0
  %1688 = vmatprep.subr.mxu0 0.0
  %1689 = vmatpush2.msra.mxu0 0.0
  %1690 = vmatprep.subr.mxu0 0.0
  %1691 = vmatpush2.msra.mxu0 0.0
  %1692 = vmatprep.subr.mxu0 0.0
  %1693 = vmatpush2.msra.mxu0 0.0
  %1694 = vmatprep.subr.mxu0 0.0
  %1695 = vmatpush2.msra.mxu0 0.0
  %1696 = vmatprep.subr.mxu0 0.0
  %1697 = vmatpush2.msra.mxu0 0.0
  %1698 = vmatprep.subr.mxu0 0.0
  %1699 = vmatpush2.msra.mxu0 0.0
  %1700 = vmatprep.subr.mxu0 0.0
  %1701 = vmatpush2.msra.mxu0 0.0
  %1702 = vmatprep.subr.mxu0 0.0
  %1703 = vmatpush2.msra.mxu0 0.0
  %1704 = vmatprep.subr.mxu0 0.0
  %1705 = vmatpush2.msra.mxu0 0.0
  %1706 = vmatprep.subr.mxu0 0.0
  %1707 = vmatpush2.msra.mxu0 0.0
  %1708 = vmatprep.mubr.f32.mxu0 0.0
  %1709 = vmatmul.mubr.f32.gmra.mxu0 %v1642
  %v1710 = vpop.f32.mrf.mxu0
  %v1711 = vadd.f32 %v1137, %v1710
  %v1712 = vpop.f32.mrf.mxu0
  %1713 = vdwg.mxu0
  %v1714 = vadd.f32 %v1120, %v1711
  %v1715 = vxor.u32 %v1714, 2147483648
  %v1716 = vmul.f32 %v1715, 1.442695
  %v1717 = vpow.pop %v1716
  %v1718 = vadd.f32 %v1717, 1.0
  %v1719 = vrcp.pop %v1718
  %v1720 = vmul.f32 1.0, %v1719
  %1722 = vrot.lane.b32.xlu0 %v1711, 64
  %v1723 = vpop.permute.xlu0 %1722
  %v1725 = vmul.f32 %v1720, %v1723
  %1727 = vrot.lane.b32.xlu0 %v1725, 64
  %v1728 = vpop.permute.xlu0 %1727
  %v1730 = vadd.f32 %v1120, %v1728
  %v1731 = vtanh.pop %v1730
  %v1732 = vsub.f32 1.0, %v1720
  %1734 = vrot.lane.b32.xlu0 %v1731, 96
  %v1735 = vpop.permute.xlu0 %1734
  %v1737 = vmul.f32 %v1732, %v1735
  %v1738 = vmul.f32 %v1720, %v1638
  %v1739 = vadd.f32 %v1737, %v1738
  %1741 = vrot.lane.b32.xlu0 %v1739, 96
  %v1742 = vpop.permute.xlu0 %1741
  %v1743 = vsel %vm200, %v1742, 0
  %1745 = vmatprep.subr.mxu0 0.0
  %1746 = vmatpush1.msra.mxu0 0.0
  %1747 = vmatprep.subr.mxu0 0.0
  %1748 = vmatpush1.msra.mxu0 0.0
  %1749 = vmatprep.subr.mxu0 0.0
  %1750 = vmatpush1.msra.mxu0 0.0
  %1751 = vmatprep.subr.mxu0 0.0
  %1752 = vmatpush1.msra.mxu0 0.0
  %1753 = vmatprep.subr.mxu0 0.0
  %1754 = vmatpush1.msra.mxu0 0.0
  %1755 = vmatprep.subr.mxu0 0.0
  %1756 = vmatpush1.msra.mxu0 0.0
  %1757 = vmatprep.subr.mxu0 0.0
  %1758 = vmatpush1.msra.mxu0 0.0
  %1759 = vmatprep.subr.mxu0 0.0
  %1760 = vmatpush1.msra.mxu0 0.0
  %1761 = vmatprep.subr.mxu0 0.0
  %1762 = vmatpush1.msra.mxu0 0.0
  %1763 = vmatprep.subr.mxu0 0.0
  %1764 = vmatpush1.msra.mxu0 0.0
  %1765 = vmatprep.subr.mxu0 0.0
  %1766 = vmatpush1.msra.mxu0 0.0
  %1767 = vmatprep.subr.mxu0 0.0
  %1768 = vmatpush1.msra.mxu0 0.0
  %1769 = vmatprep.subr.mxu0 0.0
  %1770 = vmatpush1.msra.mxu0 %v1014
  %1771 = vmatprep.subr.mxu0 0.0
  %1772 = vmatpush1.msra.mxu0 %v1013
  %1773 = vmatprep.subr.mxu0 0.0
  %1774 = vmatpush1.msra.mxu0 %v1012
  %1775 = vmatprep.subr.mxu0 0.0
  %1776 = vmatpush1.msra.mxu0 %v1011
  %1777 = vmatprep.subr.mxu0 0.0
  %1778 = vmatpush2.msra.mxu0 0.0
  %1779 = vmatprep.subr.mxu0 0.0
  %1780 = vmatpush2.msra.mxu0 0.0
  %1781 = vmatprep.subr.mxu0 0.0
  %1782 = vmatpush2.msra.mxu0 0.0
  %1783 = vmatprep.subr.mxu0 0.0
  %1784 = vmatpush2.msra.mxu0 0.0
  %1785 = vmatprep.subr.mxu0 0.0
  %1786 = vmatpush2.msra.mxu0 0.0
  %1787 = vmatprep.subr.mxu0 0.0
  %1788 = vmatpush2.msra.mxu0 0.0
  %1789 = vmatprep.subr.mxu0 0.0
  %1790 = vmatpush2.msra.mxu0 0.0
  %1791 = vmatprep.subr.mxu0 0.0
  %1792 = vmatpush2.msra.mxu0 0.0
  %1793 = vmatprep.subr.mxu0 0.0
  %1794 = vmatpush2.msra.mxu0 0.0
  %1795 = vmatprep.subr.mxu0 0.0
  %1796 = vmatpush2.msra.mxu0 0.0
  %1797 = vmatprep.subr.mxu0 0.0
  %1798 = vmatpush2.msra.mxu0 0.0
  %1799 = vmatprep.subr.mxu0 0.0
  %1800 = vmatpush2.msra.mxu0 0.0
  %1801 = vmatprep.subr.mxu0 0.0
  %1802 = vmatpush2.msra.mxu0 0.0
  %1803 = vmatprep.subr.mxu0 0.0
  %1804 = vmatpush2.msra.mxu0 0.0
  %1805 = vmatprep.subr.mxu0 0.0
  %1806 = vmatpush2.msra.mxu0 0.0
  %1807 = vmatprep.subr.mxu0 0.0
  %1808 = vmatpush2.msra.mxu0 0.0
  %1809 = vmatprep.mubr.f32.mxu0 0.0
  %1810 = vmatmul.mubr.f32.gmra.mxu0 %v1743
  %v1811 = vpop.f32.mrf.mxu0
  %v1812 = vadd.f32 %v1137, %v1811
  %v1813 = vpop.f32.mrf.mxu0
  %1814 = vdwg.mxu0
  %v1815 = vadd.f32 %v1125, %v1812
  %v1816 = vxor.u32 %v1815, 2147483648
  %v1817 = vmul.f32 %v1816, 1.442695
  %v1818 = vpow.pop %v1817
  %v1819 = vadd.f32 %v1818, 1.0
  %v1820 = vrcp.pop %v1819
  %v1821 = vmul.f32 1.0, %v1820
  %1823 = vrot.lane.b32.xlu0 %v1812, 64
  %v1824 = vpop.permute.xlu0 %1823
  %v1826 = vmul.f32 %v1821, %v1824
  %1828 = vrot.lane.b32.xlu0 %v1826, 64
  %v1829 = vpop.permute.xlu0 %1828
  %v1831 = vadd.f32 %v1125, %v1829
  %v1832 = vtanh.pop %v1831
  %v1833 = vsub.f32 1.0, %v1821
  %1835 = vrot.lane.b32.xlu0 %v1832, 96
  %v1836 = vpop.permute.xlu0 %1835
  %v1838 = vmul.f32 %v1833, %v1836
  %v1839 = vmul.f32 %v1821, %v1739
  %v1840 = vadd.f32 %v1838, %v1839
  %1842 = vrot.lane.b32.xlu0 %v1840, 96
  %v1843 = vpop.permute.xlu0 %1842
  %v1844 = vsel %vm200, %v1843, 0
  %1846 = vmatprep.subr.mxu0 0.0
  %1847 = vmatpush1.msra.mxu0 0.0
  %1848 = vmatprep.subr.mxu0 0.0
  %1849 = vmatpush1.msra.mxu0 0.0
  %1850 = vmatprep.subr.mxu0 0.0
  %1851 = vmatpush1.msra.mxu0 0.0
  %1852 = vmatprep.subr.mxu0 0.0
  %1853 = vmatpush1.msra.mxu0 0.0
  %1854 = vmatprep.subr.mxu0 0.0
  %1855 = vmatpush1.msra.mxu0 0.0
  %1856 = vmatprep.subr.mxu0 0.0
  %1857 = vmatpush1.msra.mxu0 0.0
  %1858 = vmatprep.subr.mxu0 0.0
  %1859 = vmatpush1.msra.mxu0 0.0
  %1860 = vmatprep.subr.mxu0 0.0
  %1861 = vmatpush1.msra.mxu0 0.0
  %1862 = vmatprep.subr.mxu0 0.0
  %1863 = vmatpush1.msra.mxu0 0.0
  %1864 = vmatprep.subr.mxu0 0.0
  %1865 = vmatpush1.msra.mxu0 0.0
  %1866 = vmatprep.subr.mxu0 0.0
  %1867 = vmatpush1.msra.mxu0 0.0
  %1868 = vmatprep.subr.mxu0 0.0
  %1869 = vmatpush1.msra.mxu0 0.0
  %1870 = vmatprep.subr.mxu0 0.0
  %1871 = vmatpush1.msra.mxu0 %v1014
  %1872 = vmatprep.subr.mxu0 0.0
  %1873 = vmatpush1.msra.mxu0 %v1013
  %1874 = vmatprep.subr.mxu0 0.0
  %1875 = vmatpush1.msra.mxu0 %v1012
  %1876 = vmatprep.subr.mxu0 0.0
  %1877 = vmatpush1.msra.mxu0 %v1011
  %1878 = vmatprep.subr.mxu0 0.0
  %1879 = vmatpush2.msra.mxu0 0.0
  %1880 = vmatprep.subr.mxu0 0.0
  %1881 = vmatpush2.msra.mxu0 0.0
  %1882 = vmatprep.subr.mxu0 0.0
  %1883 = vmatpush2.msra.mxu0 0.0
  %1884 = vmatprep.subr.mxu0 0.0
  %1885 = vmatpush2.msra.mxu0 0.0
  %1886 = vmatprep.subr.mxu0 0.0
  %1887 = vmatpush2.msra.mxu0 0.0
  %1888 = vmatprep.subr.mxu0 0.0
  %1889 = vmatpush2.msra.mxu0 0.0
  %1890 = vmatprep.subr.mxu0 0.0
  %1891 = vmatpush2.msra.mxu0 0.0
  %1892 = vmatprep.subr.mxu0 0.0
  %1893 = vmatpush2.msra.mxu0 0.0
  %1894 = vmatprep.subr.mxu0 0.0
  %1895 = vmatpush2.msra.mxu0 0.0
  %1896 = vmatprep.subr.mxu0 0.0
  %1897 = vmatpush2.msra.mxu0 0.0
  %1898 = vmatprep.subr.mxu0 0.0
  %1899 = vmatpush2.msra.mxu0 0.0
  %1900 = vmatprep.subr.mxu0 0.0
  %1901 = vmatpush2.msra.mxu0 0.0
  %1902 = vmatprep.subr.mxu0 0.0
  %1903 = vmatpush2.msra.mxu0 0.0
  %1904 = vmatprep.subr.mxu0 0.0
  %1905 = vmatpush2.msra.mxu0 0.0
  %1906 = vmatprep.subr.mxu0 0.0
  %1907 = vmatpush2.msra.mxu0 0.0
  %1908 = vmatprep.subr.mxu0 0.0
  %1909 = vmatpush2.msra.mxu0 0.0
  %1910 = vmatprep.mubr.f32.mxu0 0.0
  %1911 = vmatmul.mubr.f32.gmra.mxu0 %v1844
  %v1912 = vpop.f32.mrf.mxu0
  %v1913 = vadd.f32 %v1137, %v1912
  %v1914 = vpop.f32.mrf.mxu0
  %1915 = vdwg.mxu0
  %v1916 = vadd.f32 %v1130, %v1913
  %v1917 = vxor.u32 %v1916, 2147483648
  %v1918 = vmul.f32 %v1917, 1.442695
  %v1919 = vpow.pop %v1918
  %v1920 = vadd.f32 %v1919, 1.0
  %v1921 = vrcp.pop %v1920
  %v1922 = vmul.f32 1.0, %v1921
  %1924 = vrot.lane.b32.xlu0 %v1913, 64
  %v1925 = vpop.permute.xlu0 %1924
  %v1927 = vmul.f32 %v1922, %v1925
  %1929 = vrot.lane.b32.xlu0 %v1927, 64
  %v1930 = vpop.permute.xlu0 %1929
  %v1932 = vadd.f32 %v1130, %v1930
  %v1933 = vtanh.pop %v1932
  %v1934 = vsub.f32 1.0, %v1922
  %1936 = vrot.lane.b32.xlu0 %v1933, 96
  %v1937 = vpop.permute.xlu0 %1936
  %v1939 = vmul.f32 %v1934, %v1937
  %v1940 = vmul.f32 %v1922, %v1840
  %v1941 = vadd.f32 %v1939, %v1940
  %v1942 = vld [vmem:[%s9] sm:$0xff]
  %v1943 = vld [vmem:[%s9 + $0x8] sm:$0xff]
  %v1944 = vld [vmem:[%s9 + $0x10] sm:$0xff]
  %v1945 = vld [vmem:[%s9 + $0x18] sm:$0xff]
  %v1946 = vld [vmem:[%s10] sm:$0x1]
  %v1948 = vlaneseq
  %v1949 = vshrl.u32 %v1948, 7
  %v1950 = vsub.s32 0, %v1949
  %v1951 = vrot.slane %v1946, %v1950
  %1954 = vrot.lane.b32.xlu0 %v1941, 96
  %v1955 = vpop.permute.xlu0 %1954
  %v1956 = vsel %vm200, %v1955, 0
  %1958 = vmatprep.subr.mxu0 0.0
  %1959 = vmatpush1.msra.mxu0 0.0
  %1960 = vmatprep.subr.mxu0 0.0
  %1961 = vmatpush1.msra.mxu0 0.0
  %1962 = vmatprep.subr.mxu0 0.0
  %1963 = vmatpush1.msra.mxu0 0.0
  %1964 = vmatprep.subr.mxu0 0.0
  %1965 = vmatpush1.msra.mxu0 0.0
  %1966 = vmatprep.subr.mxu0 0.0
  %1967 = vmatpush1.msra.mxu0 0.0
  %1968 = vmatprep.subr.mxu0 0.0
  %1969 = vmatpush1.msra.mxu0 0.0
  %1970 = vmatprep.subr.mxu0 0.0
  %1971 = vmatpush1.msra.mxu0 0.0
  %1972 = vmatprep.subr.mxu0 0.0
  %1973 = vmatpush1.msra.mxu0 0.0
  %1974 = vmatprep.subr.mxu0 0.0
  %1975 = vmatpush1.msra.mxu0 0.0
  %1976 = vmatprep.subr.mxu0 0.0
  %1977 = vmatpush1.msra.mxu0 0.0
  %1978 = vmatprep.subr.mxu0 0.0
  %1979 = vmatpush1.msra.mxu0 0.0
  %1980 = vmatprep.subr.mxu0 0.0
  %1981 = vmatpush1.msra.mxu0 0.0
  %1982 = vmatprep.subr.mxu0 0.0
  %1983 = vmatpush1.msra.mxu0 %v1945
  %1984 = vmatprep.subr.mxu0 0.0
  %1985 = vmatpush1.msra.mxu0 %v1944
  %1986 = vmatprep.subr.mxu0 0.0
  %1987 = vmatpush1.msra.mxu0 %v1943
  %1988 = vmatprep.subr.mxu0 0.0
  %1989 = vmatpush1.msra.mxu0 %v1942
  %1990 = vmatprep.subr.mxu0 0.0
  %1991 = vmatpush2.msra.mxu0 0.0
  %1992 = vmatprep.subr.mxu0 0.0
  %1993 = vmatpush2.msra.mxu0 0.0
  %1994 = vmatprep.subr.mxu0 0.0
  %1995 = vmatpush2.msra.mxu0 0.0
  %1996 = vmatprep.subr.mxu0 0.0
  %1997 = vmatpush2.msra.mxu0 0.0
  %1998 = vmatprep.subr.mxu0 0.0
  %1999 = vmatpush2.msra.mxu0 0.0
  %2000 = vmatprep.subr.mxu0 0.0
  %2001 = vmatpush2.msra.mxu0 0.0
  %2002 = vmatprep.subr.mxu0 0.0
  %2003 = vmatpush2.msra.mxu0 0.0
  %2004 = vmatprep.subr.mxu0 0.0
  %2005 = vmatpush2.msra.mxu0 0.0
  %2006 = vmatprep.subr.mxu0 0.0
  %2007 = vmatpush2.msra.mxu0 0.0
  %2008 = vmatprep.subr.mxu0 0.0
  %2009 = vmatpush2.msra.mxu0 0.0
  %2010 = vmatprep.subr.mxu0 0.0
  %2011 = vmatpush2.msra.mxu0 0.0
  %2012 = vmatprep.subr.mxu0 0.0
  %2013 = vmatpush2.msra.mxu0 0.0
  %2014 = vmatprep.subr.mxu0 0.0
  %2015 = vmatpush2.msra.mxu0 0.0
  %2016 = vmatprep.subr.mxu0 0.0
  %2017 = vmatpush2.msra.mxu0 0.0
  %2018 = vmatprep.subr.mxu0 0.0
  %2019 = vmatpush2.msra.mxu0 0.0
  %2020 = vmatprep.subr.mxu0 0.0
  %2021 = vmatpush2.msra.mxu0 0.0
  %2022 = vmatprep.mubr.f32.mxu0 0.0
  %2023 = vmatmul.mubr.f32.gmra.mxu0 %v1956
  %v2024 = vpop.f32.mrf.mxu0
  %v2025 = vadd.f32 %v1951, %v2024
  %v2026 = vpop.f32.mrf.mxu0
  %2027 = vdwg.mxu0
  %vm2028 = vcmask 15360
  %2029 = vst.msk [vmem:[%s11] sm:$0xff] %vm2028, %v2025
  // Predicated region
  $region46: #{rnn_forward.1} parent=0 // pred_check
    _
  $region47: #{rnn_forward.1} parent=0 // pred_check_branch
    %2031 = sbr.rel (0) target = $region49
  $region48: #{rnn_forward.1} parent=0 // pred_region
    _
  $region49: #{rnn_forward.1} parent=0 // pred_fallthru
    _
  // Predicated region
  $region50: #{rnn_forward.1} parent=0 // pred_check
    _
  $region51: #{rnn_forward.1} parent=0 // pred_check_branch
    %2033 = sbr.rel (0) target = $region53
  $region52: #{rnn_forward.1} parent=0 // pred_region
    _
  $region53: #{rnn_forward.1} parent=0 // pred_fallthru
    _

</llo_original>
